<compile_context>
chip_gen: v7x
topology: tpu7x:2x2x1
jax: 0.10.0
libtpu: 0.0.40
codegen_flags: <defaults>
</compile_context>

<pallas_src>
import functools

import jax
import jax.numpy as jnp
from jax.experimental import pallas as pl
from jax.experimental.pallas import tpu as pltpu


_P = 256          # hidden_dims[0]; width of the dense middle of the network
_KPAD = 128       # padded contraction width for the small input layer
_GATE_LANE = 127  # lane of the merged output that carries the attention gate

# (row_offset, rows) of each weight chunk inside w_all [1536, 256] bf16.
_CHUNKS = (
    (0,    128),   # 0: w0            (K padded 32->128, N=256)
    (128,  256),   # 1: a1            (residual 1, first Linear)
    (384,  256),   # 2: c1            (residual 1, second Linear)
    (640,  256),   # 3: a2            (residual 2, first Linear)
    (896,  256),   # 4: c2            (residual 2, second Linear)
    (1152, 256),   # 5: [wa1 | wp0]   (attention hidden | processing 0)
    (1408, 128),   # 6: [wp1 | wo ]   (processing 1     | output head)
)
_W_ROWS = 1536


# ----------------------------------------------------------------------------
# Kernel: full forward pass, manual double-buffered weight DMA.
# ----------------------------------------------------------------------------
def _classifier_kernel(x_ref, b_ref, w_hbm, out_ref, wbuf, sem):
    """x_ref [B,128] bf16, b_ref [8,256] f32, w_hbm [1536,256] bf16 (HBM),
    out_ref [B,128] f32, wbuf [2,256,256] bf16 scratch, sem DMA((2,))."""
    f32, bf16 = jnp.float32, jnp.bfloat16

    def copy(idx, slot):
        start, rows = _CHUNKS[idx]
        return pltpu.make_async_copy(
            w_hbm.at[start:start + rows, :],
            wbuf.at[slot, :rows, :],
            sem.at[slot])

    def mxu(h, w):
        return jnp.dot(h.astype(bf16), w, preferred_element_type=f32)

    relu = lambda v: jnp.maximum(v, 0.0)

    # Prologue: prime both slots so the DMA engine never idles.
    copy(0, 0).start()
    copy(1, 1).start()

    # ---- chunk 0 (slot 0): feature_processor  Linear(32->256)+BN+ReLU ------
    copy(0, 0).wait()
    h = relu(mxu(x_ref[...], wbuf[0, :128, :]) + b_ref[0:1, :])     # [B,256]
    copy(2, 0).start()

    # ---- chunk 1 (slot 1): residual block 1, first Linear -------------------
    copy(1, 1).wait()
    t = relu(mxu(h, wbuf[1]) + b_ref[1:2, :])
    copy(3, 1).start()

    # ---- chunk 2 (slot 0): residual block 1, second Linear + skip -----------
    copy(2, 0).wait()
    h = relu(h + mxu(t, wbuf[0]) + b_ref[2:3, :])
    copy(4, 0).start()

    # ---- chunk 3 (slot 1): residual block 2, first Linear -------------------
    copy(3, 1).wait()
    t = relu(mxu(h, wbuf[1]) + b_ref[3:4, :])
    copy(5, 1).start()

    # ---- chunk 4 (slot 0): residual block 2, second Linear + skip -----------
    copy(4, 0).wait()
    h = relu(h + mxu(t, wbuf[0]) + b_ref[4:5, :])
    copy(6, 0).start()

    # ---- chunk 5 (slot 1): fused [wa1 | wp0] --------------------------------
    # gate is a per-row scalar, so (gate*h) @ wp0 == gate * (h @ wp0); this
    # lets the attention hidden and processing-layer-0 share one 256x256 pass.
    copy(5, 1).wait()
    z = mxu(h, wbuf[1])                                             # [B,256]
    a = relu(z[:, :128] + b_ref[5:6, :128])                         # [B,128]
    gate_logit = (jnp.sum(a * b_ref[6:7, :128], axis=-1, keepdims=True)
                  + b_ref[6:7, 128:129])                            # [B,1]
    # numerically stable sigmoid (EUP exp + VPU select/div)
    e = jnp.exp(-jnp.abs(gate_logit))
    gate = jnp.where(gate_logit >= 0.0, 1.0 / (1.0 + e), e / (1.0 + e))
    h = relu(gate * z[:, 128:] + b_ref[5:6, 128:])                  # [B,128]

    # ---- chunk 6 (slot 0): fused [wp1 | wo] + merged output -----------------
    copy(6, 0).wait()
    h = relu(mxu(h, wbuf[0, :128, :128]) + b_ref[7:8, :128])        # [B,128]
    out128 = mxu(h, wbuf[0, :128, 128:]) + b_ref[7:8, 128:]         # [B,128]
    lane = jax.lax.broadcasted_iota(jnp.int32, out128.shape, 1)
    out_ref[...] = jnp.where(lane == _GATE_LANE, gate, out128).astype(out_ref.dtype)


# ----------------------------------------------------------------------------
# Parameter init (PyTorch-style), BN folding, and packing into slabs.
# ----------------------------------------------------------------------------
def _linear_init(key, fan_in, fan_out):
    """uniform(-1/sqrt(fan_in), 1/sqrt(fan_in)); W stored [in, out], b [out]."""
    kw, kb = jax.random.split(key)
    bound = 1.0 / jnp.sqrt(jnp.float32(fan_in))
    w = jax.random.uniform(kw, (fan_in, fan_out), jnp.float32, -bound, bound)
    b = jax.random.uniform(kb, (fan_out,), jnp.float32, -bound, bound)
    return w, b


def _fold_bn(w, b, n, eps=1e-5):
    """Fold a fresh eval-mode BatchNorm1d (gamma=1, beta=0, mean=0, var=1)."""
    s = 1.0 / jnp.sqrt(jnp.ones((n,), jnp.float32) + eps)
    return w * s[None, :], b * s


def init_raw_params(key, input_dim, hidden_dims=(256, 128, 64), num_classes=4):
    keys = jax.random.split(key, 10)
    h0, h1, h2 = hidden_dims
    p = {}
    p["w0"], p["b0"] = _fold_bn(*_linear_init(keys[0], input_dim, h0), h0)
    for blk in (1, 2):
        wa, ba = _fold_bn(*_linear_init(keys[2 * blk - 1], h0, h0), h0)
        wc, bc = _fold_bn(*_linear_init(keys[2 * blk], h0, h0), h0)
        p[f"a{blk}"], p[f"ab{blk}"] = wa, ba
        p[f"c{blk}"], p[f"cb{blk}"] = wc, bc
    p["wa1"], p["ba1"] = _linear_init(keys[5], h0, h0 // 2)
    p["wa2"], p["ba2"] = _linear_init(keys[6], h0 // 2, 1)
    p["wp0"], p["bp0"] = _fold_bn(*_linear_init(keys[7], h0, h1), h1)
    p["wp1"], p["bp1"] = _fold_bn(*_linear_init(keys[8], h1, h2), h2)
    p["wo"], p["bo"] = _linear_init(keys[9], h2, num_classes)
    return p


def pack_params(p, input_dim, hidden_dims=(256, 128, 64), num_classes=4):
    """Pack weights into a tight [1536,256] bf16 slab and biases/gate-weight
    into an [8,256] f32 slab (see _CHUNKS layout)."""
    h0, h1, h2 = hidden_dims
    assert h0 == _P, "kernel is specialized for hidden_dims[0] == 256"
    assert h1 == 128 and h2 == 64, "kernel is specialized for hidden_dims (256,128,64)"
    assert input_dim <= _KPAD, "input_dim must fit the 128-lane padded K of layer 0"
    assert num_classes < _GATE_LANE, "logit lanes must not collide with the gate lane"
    assert p["wa1"].shape[1] == h0 // 2 and p["wa2"].shape == (h0 // 2, 1)

    w = jnp.zeros((_W_ROWS, _P), jnp.float32)
    w = w.at[0:input_dim, :].set(p["w0"])
    w = w.at[128:384, :].set(p["a1"])
    w = w.at[384:640, :].set(p["c1"])
    w = w.at[640:896, :].set(p["a2"])
    w = w.at[896:1152, :].set(p["c2"])
    w = w.at[1152:1408, 0:128].set(p["wa1"])
    w = w.at[1152:1408, 128:256].set(p["wp0"])
    w = w.at[1408:1408 + h1, 0:h2].set(p["wp1"])
    w = w.at[1408:1408 + h2, 128:128 + num_classes].set(p["wo"])
    w_all = w.astype(jnp.bfloat16)

    b = jnp.zeros((8, _P), jnp.float32)
    b = b.at[0, :].set(p["b0"])
    b = b.at[1, :].set(p["ab1"])
    b = b.at[2, :].set(p["cb1"])
    b = b.at[3, :].set(p["ab2"])
    b = b.at[4, :].set(p["cb2"])
    b = b.at[5, 0:128].set(p["ba1"])          # attention hidden bias
    b = b.at[5, 128:256].set(p["bp0"])        # processing layer 0 bias
    b = b.at[6, 0:128].set(p["wa2"][:, 0])    # attention output weight column
    b = b.at[6, 128].set(p["ba2"][0])         # attention output bias
    b = b.at[7, 0:h2].set(p["bp1"])           # processing layer 1 bias
    b = b.at[7, 128:128 + num_classes].set(p["bo"])   # output-head bias
    return w_all, b


# ----------------------------------------------------------------------------
# Wrapper.
# ----------------------------------------------------------------------------
@functools.partial(jax.jit, static_argnames=("num_classes",))
def enhanced_dysarthria_classifier(x, w_all, b_all, num_classes=4):
    """Returns (logits [B, num_classes], attention_weights [B, 1, 1])."""
    B, in_dim = x.shape
    x_pad = jnp.zeros((B, _KPAD), jnp.bfloat16).at[:, :in_dim].set(
        x.astype(jnp.bfloat16))

    vmem = pl.BlockSpec(memory_space=pltpu.MemorySpace.VMEM)
    hbm = pl.BlockSpec(memory_space=pl.ANY)   # weights stay in HBM, DMA'd manually

    flops = 2 * B * (128 * 256 + 5 * 256 * 256 + 2 * 128 * 128)
    bytes_accessed = (w_all.size * 2 + b_all.size * 4
                      + x_pad.size * 2 + B * 128 * 4)

    out = pl.pallas_call(
        _classifier_kernel,
        out_shape=jax.ShapeDtypeStruct((B, 128), jnp.float32),
        in_specs=[vmem, vmem, hbm],
        out_specs=vmem,
        scratch_shapes=[pltpu.VMEM((2, _P, _P), jnp.bfloat16),
                        pltpu.SemaphoreType.DMA((2,))],
        cost_estimate=pl.CostEstimate(flops=flops, transcendentals=B,
                                      bytes_accessed=bytes_accessed),
    )(x_pad, b_all, w_all)

    logits = out[:, :num_classes]
    attn = out[:, _GATE_LANE:_GATE_LANE + 1].reshape(B, 1, 1)
    return logits, attn


# Plain-JAX reference mirroring the kernel's bf16-weight / f32-accumulate math.
# (The wp0 layer is written as gate * (h @ wp0) + bp0, mathematically identical
# to (gate*h) @ wp0 + bp0 since gate is a per-row scalar — same factorisation
# the kernel uses.)
def _reference(x, p):
    bf, f32 = jnp.bfloat16, jnp.float32
    dot = lambda h, w: jnp.dot(h.astype(bf), w.astype(bf), preferred_element_type=f32)
    relu = lambda v: jnp.maximum(v, 0.0)
    h = relu(dot(x, p["w0"]) + p["b0"])
    t = relu(dot(h, p["a1"]) + p["ab1"])
    h = relu(h + dot(t, p["c1"]) + p["cb1"])
    t = relu(dot(h, p["a2"]) + p["ab2"])
    h = relu(h + dot(t, p["c2"]) + p["cb2"])
    a = relu(dot(h, p["wa1"]) + p["ba1"])
    g = jax.nn.sigmoid(a @ p["wa2"] + p["ba2"])
    h = relu(g * dot(h, p["wp0"]) + p["bp0"])
    h = relu(dot(h, p["wp1"]) + p["bp1"])
    logits = dot(h, p["wo"]) + p["bo"]
    return logits, g.reshape(x.shape[0], 1, 1)


if __name__ == "__main__":
    B, INPUT_DIM, NUM_CLASSES = 8, 32, 4
    HIDDEN = (256, 128, 64)

    key = jax.random.PRNGKey(0)
    k_x, k_p = jax.random.split(key)
    x = jax.random.normal(k_x, (B, INPUT_DIM), jnp.float32)

    raw = init_raw_params(k_p, INPUT_DIM, hidden_dims=HIDDEN, num_classes=NUM_CLASSES)
    w_all, b_all = pack_params(raw, INPUT_DIM, hidden_dims=HIDDEN,
                               num_classes=NUM_CLASSES)

    logits, attn_w = enhanced_dysarthria_classifier(x, w_all, b_all,
                                                    num_classes=NUM_CLASSES)
    jax.block_until_ready((logits, attn_w))

    ref_logits, ref_attn = _reference(x, raw)
    assert logits.shape == (B, NUM_CLASSES)
    assert attn_w.shape == (B, 1, 1)
    assert jnp.allclose(logits, ref_logits, rtol=2e-3, atol=2e-3), (
        jnp.max(jnp.abs(logits - ref_logits)))
    assert jnp.allclose(attn_w, ref_attn, rtol=2e-3, atol=2e-3), (
        jnp.max(jnp.abs(attn_w - ref_attn)))

    print("KERNEL_OK")
</pallas_src>

<mosaic_0001>
module attributes {stable_mosaic.version = 11 : i64} {
  func.func @_classifier_kernel(%arg0: memref<8x128xbf16, #tpu.memory_space<vmem>>, %arg1: memref<8x256xf32, #tpu.memory_space<vmem>>, %arg2: memref<1536x256xbf16, #tpu.memory_space<any>>, %arg3: memref<8x128xf32, #tpu.memory_space<vmem>>, %arg4: memref<2x256x256xbf16, #tpu.memory_space<vmem>>, %arg5: memref<2x!tpu.dma_semaphore, #tpu.memory_space<semaphore_mem>>) attributes {dimension_semantics = [], scalar_prefetch = 0 : i64, scratch_operands = 2 : i64, tpu.core_type = #tpu.core_type<tc>} {
    %c0_i32 = arith.constant 0 : i32
    %c0_i32_0 = arith.constant 0 : i32
    %c0_i32_1 = arith.constant 0 : i32
    %c0_i32_2 = arith.constant 0 : i32
    %0 = tpu.memref_slice %arg2[%c0_i32_1, %c0_i32_2] : memref<1536x256xbf16, #tpu.memory_space<any>> -> memref<128x256xbf16, #tpu.memory_space<any>>
    %c0_i32_3 = arith.constant 0 : i32
    %c0_i32_4 = arith.constant 0 : i32
    %1 = tpu.memref_slice %arg4[%c0_i32, %c0_i32_3, %c0_i32_4] : memref<2x256x256xbf16, #tpu.memory_space<vmem>> -> memref<1x128x256xbf16, #tpu.memory_space<vmem>>
    %2 = tpu.memref_squeeze %1 : memref<1x128x256xbf16, #tpu.memory_space<vmem>> -> memref<128x256xbf16, #tpu.memory_space<vmem>>
    %3 = tpu.memref_slice %arg5[%c0_i32_0] : memref<2x!tpu.dma_semaphore, #tpu.memory_space<semaphore_mem>> -> memref<1x!tpu.dma_semaphore, #tpu.memory_space<semaphore_mem>>
    %4 = tpu.memref_squeeze %3 : memref<1x!tpu.dma_semaphore, #tpu.memory_space<semaphore_mem>> -> memref<!tpu.dma_semaphore, #tpu.memory_space<semaphore_mem>>
    tpu.enqueue_dma source(%0 : memref<128x256xbf16, #tpu.memory_space<any>>) target(%2 : memref<128x256xbf16, #tpu.memory_space<vmem>>) target_semaphore(%4 : memref<!tpu.dma_semaphore, #tpu.memory_space<semaphore_mem>>)
    %c1_i32 = arith.constant 1 : i32
    %c1_i32_5 = arith.constant 1 : i32
    %c128_i32 = arith.constant 128 : i32
    %c0_i32_6 = arith.constant 0 : i32
    %5 = tpu.memref_slice %arg2[%c128_i32, %c0_i32_6] : memref<1536x256xbf16, #tpu.memory_space<any>> -> memref<256x256xbf16, #tpu.memory_space<any>>
    %c0_i32_7 = arith.constant 0 : i32
    %c0_i32_8 = arith.constant 0 : i32
    %6 = tpu.memref_slice %arg4[%c1_i32, %c0_i32_7, %c0_i32_8] : memref<2x256x256xbf16, #tpu.memory_space<vmem>> -> memref<1x256x256xbf16, #tpu.memory_space<vmem>>
    %7 = tpu.memref_squeeze %6 : memref<1x256x256xbf16, #tpu.memory_space<vmem>> -> memref<256x256xbf16, #tpu.memory_space<vmem>>
    %8 = tpu.memref_slice %arg5[%c1_i32_5] : memref<2x!tpu.dma_semaphore, #tpu.memory_space<semaphore_mem>> -> memref<1x!tpu.dma_semaphore, #tpu.memory_space<semaphore_mem>>
    %9 = tpu.memref_squeeze %8 : memref<1x!tpu.dma_semaphore, #tpu.memory_space<semaphore_mem>> -> memref<!tpu.dma_semaphore, #tpu.memory_space<semaphore_mem>>
    tpu.enqueue_dma source(%5 : memref<256x256xbf16, #tpu.memory_space<any>>) target(%7 : memref<256x256xbf16, #tpu.memory_space<vmem>>) target_semaphore(%9 : memref<!tpu.dma_semaphore, #tpu.memory_space<semaphore_mem>>)
    %c0_i32_9 = arith.constant 0 : i32
    %c0_i32_10 = arith.constant 0 : i32
    %c0_i32_11 = arith.constant 0 : i32
    %c0_i32_12 = arith.constant 0 : i32
    %10 = tpu.memref_slice %arg2[%c0_i32_11, %c0_i32_12] : memref<1536x256xbf16, #tpu.memory_space<any>> -> memref<128x256xbf16, #tpu.memory_space<any>>
    %c0_i32_13 = arith.constant 0 : i32
    %c0_i32_14 = arith.constant 0 : i32
    %11 = tpu.memref_slice %arg4[%c0_i32_9, %c0_i32_13, %c0_i32_14] : memref<2x256x256xbf16, #tpu.memory_space<vmem>> -> memref<1x128x256xbf16, #tpu.memory_space<vmem>>
    %12 = tpu.memref_squeeze %11 : memref<1x128x256xbf16, #tpu.memory_space<vmem>> -> memref<128x256xbf16, #tpu.memory_space<vmem>>
    %13 = tpu.memref_slice %arg5[%c0_i32_10] : memref<2x!tpu.dma_semaphore, #tpu.memory_space<semaphore_mem>> -> memref<1x!tpu.dma_semaphore, #tpu.memory_space<semaphore_mem>>
    %14 = tpu.memref_squeeze %13 : memref<1x!tpu.dma_semaphore, #tpu.memory_space<semaphore_mem>> -> memref<!tpu.dma_semaphore, #tpu.memory_space<semaphore_mem>>
    tpu.wait_dma2 semaphore(%14 : memref<!tpu.dma_semaphore, #tpu.memory_space<semaphore_mem>>) src(%10 : memref<128x256xbf16, #tpu.memory_space<any>>) dst(%12 : memref<128x256xbf16, #tpu.memory_space<vmem>>)
    %c0 = arith.constant 0 : index
    %c0_15 = arith.constant 0 : index
    %15 = vector.load %arg0[%c0, %c0_15] : memref<8x128xbf16, #tpu.memory_space<vmem>>, vector<8x128xbf16>
    %c0_16 = arith.constant 0 : index
    %c0_17 = arith.constant 0 : index
    %c0_18 = arith.constant 0 : index
    %16 = vector.load %arg4[%c0_16, %c0_17, %c0_18] : memref<2x256x256xbf16, #tpu.memory_space<vmem>>, vector<1x128x256xbf16>
    %17 = vector.shape_cast %16 : vector<1x128x256xbf16> to vector<128x256xbf16>
    %cst = arith.constant dense<0.000000e+00> : vector<8x256xf32>
    %18 = tpu.matmul %15, %17, %cst {dimension_numbers = #tpu.dot_dimension_numbers<[1], [0], [0], [1], [0, 0, 1, 1], [], []>} : vector<8x128xbf16>, vector<128x256xbf16>, vector<8x256xf32> -> vector<8x256xf32>
    %c0_19 = arith.constant 0 : index
    %c0_20 = arith.constant 0 : index
    %19 = vector.load %arg1[%c0_19, %c0_20] : memref<8x256xf32, #tpu.memory_space<vmem>>, vector<1x256xf32>
    %20 = vector.broadcast %19 : vector<1x256xf32> to vector<8x256xf32>
    %21 = arith.addf %18, %20 : vector<8x256xf32>
    %cst_21 = arith.constant 0.000000e+00 : f32
    %22 = vector.broadcast %cst_21 : f32 to vector<8x256xf32>
    %23 = arith.maximumf %21, %22 : vector<8x256xf32>
    %c0_i32_22 = arith.constant 0 : i32
    %c0_i32_23 = arith.constant 0 : i32
    %c384_i32 = arith.constant 384 : i32
    %c0_i32_24 = arith.constant 0 : i32
    %24 = tpu.memref_slice %arg2[%c384_i32, %c0_i32_24] : memref<1536x256xbf16, #tpu.memory_space<any>> -> memref<256x256xbf16, #tpu.memory_space<any>>
    %c0_i32_25 = arith.constant 0 : i32
    %c0_i32_26 = arith.constant 0 : i32
    %25 = tpu.memref_slice %arg4[%c0_i32_22, %c0_i32_25, %c0_i32_26] : memref<2x256x256xbf16, #tpu.memory_space<vmem>> -> memref<1x256x256xbf16, #tpu.memory_space<vmem>>
    %26 = tpu.memref_squeeze %25 : memref<1x256x256xbf16, #tpu.memory_space<vmem>> -> memref<256x256xbf16, #tpu.memory_space<vmem>>
    %27 = tpu.memref_slice %arg5[%c0_i32_23] : memref<2x!tpu.dma_semaphore, #tpu.memory_space<semaphore_mem>> -> memref<1x!tpu.dma_semaphore, #tpu.memory_space<semaphore_mem>>
    %28 = tpu.memref_squeeze %27 : memref<1x!tpu.dma_semaphore, #tpu.memory_space<semaphore_mem>> -> memref<!tpu.dma_semaphore, #tpu.memory_space<semaphore_mem>>
    tpu.enqueue_dma source(%24 : memref<256x256xbf16, #tpu.memory_space<any>>) target(%26 : memref<256x256xbf16, #tpu.memory_space<vmem>>) target_semaphore(%28 : memref<!tpu.dma_semaphore, #tpu.memory_space<semaphore_mem>>)
    %c1_i32_27 = arith.constant 1 : i32
    %c1_i32_28 = arith.constant 1 : i32
    %c128_i32_29 = arith.constant 128 : i32
    %c0_i32_30 = arith.constant 0 : i32
    %29 = tpu.memref_slice %arg2[%c128_i32_29, %c0_i32_30] : memref<1536x256xbf16, #tpu.memory_space<any>> -> memref<256x256xbf16, #tpu.memory_space<any>>
    %c0_i32_31 = arith.constant 0 : i32
    %c0_i32_32 = arith.constant 0 : i32
    %30 = tpu.memref_slice %arg4[%c1_i32_27, %c0_i32_31, %c0_i32_32] : memref<2x256x256xbf16, #tpu.memory_space<vmem>> -> memref<1x256x256xbf16, #tpu.memory_space<vmem>>
    %31 = tpu.memref_squeeze %30 : memref<1x256x256xbf16, #tpu.memory_space<vmem>> -> memref<256x256xbf16, #tpu.memory_space<vmem>>
    %32 = tpu.memref_slice %arg5[%c1_i32_28] : memref<2x!tpu.dma_semaphore, #tpu.memory_space<semaphore_mem>> -> memref<1x!tpu.dma_semaphore, #tpu.memory_space<semaphore_mem>>
    %33 = tpu.memref_squeeze %32 : memref<1x!tpu.dma_semaphore, #tpu.memory_space<semaphore_mem>> -> memref<!tpu.dma_semaphore, #tpu.memory_space<semaphore_mem>>
    tpu.wait_dma2 semaphore(%33 : memref<!tpu.dma_semaphore, #tpu.memory_space<semaphore_mem>>) src(%29 : memref<256x256xbf16, #tpu.memory_space<any>>) dst(%31 : memref<256x256xbf16, #tpu.memory_space<vmem>>)
    %c1 = arith.constant 1 : index
    %c0_33 = arith.constant 0 : index
    %c0_34 = arith.constant 0 : index
    %34 = vector.load %arg4[%c1, %c0_33, %c0_34] : memref<2x256x256xbf16, #tpu.memory_space<vmem>>, vector<1x256x256xbf16>
    %35 = vector.shape_cast %34 : vector<1x256x256xbf16> to vector<256x256xbf16>
    %36 = arith.truncf %23 : vector<8x256xf32> to vector<8x256xbf16>
    %cst_35 = arith.constant dense<0.000000e+00> : vector<8x256xf32>
    %37 = tpu.matmul %36, %35, %cst_35 {dimension_numbers = #tpu.dot_dimension_numbers<[1], [0], [0], [1], [0, 0, 1, 1], [], []>} : vector<8x256xbf16>, vector<256x256xbf16>, vector<8x256xf32> -> vector<8x256xf32>
    %c1_36 = arith.constant 1 : index
    %c0_37 = arith.constant 0 : index
    %38 = vector.load %arg1[%c1_36, %c0_37] : memref<8x256xf32, #tpu.memory_space<vmem>>, vector<1x256xf32>
    %39 = vector.broadcast %38 : vector<1x256xf32> to vector<8x256xf32>
    %40 = arith.addf %37, %39 : vector<8x256xf32>
    %cst_38 = arith.constant 0.000000e+00 : f32
    %41 = vector.broadcast %cst_38 : f32 to vector<8x256xf32>
    %42 = arith.maximumf %40, %41 : vector<8x256xf32>
    %c1_i32_39 = arith.constant 1 : i32
    %c1_i32_40 = arith.constant 1 : i32
    %c640_i32 = arith.constant 640 : i32
    %c0_i32_41 = arith.constant 0 : i32
    %43 = tpu.memref_slice %arg2[%c640_i32, %c0_i32_41] : memref<1536x256xbf16, #tpu.memory_space<any>> -> memref<256x256xbf16, #tpu.memory_space<any>>
    %c0_i32_42 = arith.constant 0 : i32
    %c0_i32_43 = arith.constant 0 : i32
    %44 = tpu.memref_slice %arg4[%c1_i32_39, %c0_i32_42, %c0_i32_43] : memref<2x256x256xbf16, #tpu.memory_space<vmem>> -> memref<1x256x256xbf16, #tpu.memory_space<vmem>>
    %45 = tpu.memref_squeeze %44 : memref<1x256x256xbf16, #tpu.memory_space<vmem>> -> memref<256x256xbf16, #tpu.memory_space<vmem>>
    %46 = tpu.memref_slice %arg5[%c1_i32_40] : memref<2x!tpu.dma_semaphore, #tpu.memory_space<semaphore_mem>> -> memref<1x!tpu.dma_semaphore, #tpu.memory_space<semaphore_mem>>
    %47 = tpu.memref_squeeze %46 : memref<1x!tpu.dma_semaphore, #tpu.memory_space<semaphore_mem>> -> memref<!tpu.dma_semaphore, #tpu.memory_space<semaphore_mem>>
    tpu.enqueue_dma source(%43 : memref<256x256xbf16, #tpu.memory_space<any>>) target(%45 : memref<256x256xbf16, #tpu.memory_space<vmem>>) target_semaphore(%47 : memref<!tpu.dma_semaphore, #tpu.memory_space<semaphore_mem>>)
    %c0_i32_44 = arith.constant 0 : i32
    %c0_i32_45 = arith.constant 0 : i32
    %c384_i32_46 = arith.constant 384 : i32
    %c0_i32_47 = arith.constant 0 : i32
    %48 = tpu.memref_slice %arg2[%c384_i32_46, %c0_i32_47] : memref<1536x256xbf16, #tpu.memory_space<any>> -> memref<256x256xbf16, #tpu.memory_space<any>>
    %c0_i32_48 = arith.constant 0 : i32
    %c0_i32_49 = arith.constant 0 : i32
    %49 = tpu.memref_slice %arg4[%c0_i32_44, %c0_i32_48, %c0_i32_49] : memref<2x256x256xbf16, #tpu.memory_space<vmem>> -> memref<1x256x256xbf16, #tpu.memory_space<vmem>>
    %50 = tpu.memref_squeeze %49 : memref<1x256x256xbf16, #tpu.memory_space<vmem>> -> memref<256x256xbf16, #tpu.memory_space<vmem>>
    %51 = tpu.memref_slice %arg5[%c0_i32_45] : memref<2x!tpu.dma_semaphore, #tpu.memory_space<semaphore_mem>> -> memref<1x!tpu.dma_semaphore, #tpu.memory_space<semaphore_mem>>
    %52 = tpu.memref_squeeze %51 : memref<1x!tpu.dma_semaphore, #tpu.memory_space<semaphore_mem>> -> memref<!tpu.dma_semaphore, #tpu.memory_space<semaphore_mem>>
    tpu.wait_dma2 semaphore(%52 : memref<!tpu.dma_semaphore, #tpu.memory_space<semaphore_mem>>) src(%48 : memref<256x256xbf16, #tpu.memory_space<any>>) dst(%50 : memref<256x256xbf16, #tpu.memory_space<vmem>>)
    %c0_50 = arith.constant 0 : index
    %c0_51 = arith.constant 0 : index
    %c0_52 = arith.constant 0 : index
    %53 = vector.load %arg4[%c0_50, %c0_51, %c0_52] : memref<2x256x256xbf16, #tpu.memory_space<vmem>>, vector<1x256x256xbf16>
    %54 = vector.shape_cast %53 : vector<1x256x256xbf16> to vector<256x256xbf16>
    %55 = arith.truncf %42 : vector<8x256xf32> to vector<8x256xbf16>
    %cst_53 = arith.constant dense<0.000000e+00> : vector<8x256xf32>
    %56 = tpu.matmul %55, %54, %cst_53 {dimension_numbers = #tpu.dot_dimension_numbers<[1], [0], [0], [1], [0, 0, 1, 1], [], []>} : vector<8x256xbf16>, vector<256x256xbf16>, vector<8x256xf32> -> vector<8x256xf32>
    %57 = arith.addf %23, %56 : vector<8x256xf32>
    %c2 = arith.constant 2 : index
    %c0_54 = arith.constant 0 : index
    %58 = vector.load %arg1[%c2, %c0_54] : memref<8x256xf32, #tpu.memory_space<vmem>>, vector<1x256xf32>
    %59 = vector.broadcast %58 : vector<1x256xf32> to vector<8x256xf32>
    %60 = arith.addf %57, %59 : vector<8x256xf32>
    %cst_55 = arith.constant 0.000000e+00 : f32
    %61 = vector.broadcast %cst_55 : f32 to vector<8x256xf32>
    %62 = arith.maximumf %60, %61 : vector<8x256xf32>
    %c0_i32_56 = arith.constant 0 : i32
    %c0_i32_57 = arith.constant 0 : i32
    %c896_i32 = arith.constant 896 : i32
    %c0_i32_58 = arith.constant 0 : i32
    %63 = tpu.memref_slice %arg2[%c896_i32, %c0_i32_58] : memref<1536x256xbf16, #tpu.memory_space<any>> -> memref<256x256xbf16, #tpu.memory_space<any>>
    %c0_i32_59 = arith.constant 0 : i32
    %c0_i32_60 = arith.constant 0 : i32
    %64 = tpu.memref_slice %arg4[%c0_i32_56, %c0_i32_59, %c0_i32_60] : memref<2x256x256xbf16, #tpu.memory_space<vmem>> -> memref<1x256x256xbf16, #tpu.memory_space<vmem>>
    %65 = tpu.memref_squeeze %64 : memref<1x256x256xbf16, #tpu.memory_space<vmem>> -> memref<256x256xbf16, #tpu.memory_space<vmem>>
    %66 = tpu.memref_slice %arg5[%c0_i32_57] : memref<2x!tpu.dma_semaphore, #tpu.memory_space<semaphore_mem>> -> memref<1x!tpu.dma_semaphore, #tpu.memory_space<semaphore_mem>>
    %67 = tpu.memref_squeeze %66 : memref<1x!tpu.dma_semaphore, #tpu.memory_space<semaphore_mem>> -> memref<!tpu.dma_semaphore, #tpu.memory_space<semaphore_mem>>
    tpu.enqueue_dma source(%63 : memref<256x256xbf16, #tpu.memory_space<any>>) target(%65 : memref<256x256xbf16, #tpu.memory_space<vmem>>) target_semaphore(%67 : memref<!tpu.dma_semaphore, #tpu.memory_space<semaphore_mem>>)
    %c1_i32_61 = arith.constant 1 : i32
    %c1_i32_62 = arith.constant 1 : i32
    %c640_i32_63 = arith.constant 640 : i32
    %c0_i32_64 = arith.constant 0 : i32
    %68 = tpu.memref_slice %arg2[%c640_i32_63, %c0_i32_64] : memref<1536x256xbf16, #tpu.memory_space<any>> -> memref<256x256xbf16, #tpu.memory_space<any>>
    %c0_i32_65 = arith.constant 0 : i32
    %c0_i32_66 = arith.constant 0 : i32
    %69 = tpu.memref_slice %arg4[%c1_i32_61, %c0_i32_65, %c0_i32_66] : memref<2x256x256xbf16, #tpu.memory_space<vmem>> -> memref<1x256x256xbf16, #tpu.memory_space<vmem>>
    %70 = tpu.memref_squeeze %69 : memref<1x256x256xbf16, #tpu.memory_space<vmem>> -> memref<256x256xbf16, #tpu.memory_space<vmem>>
    %71 = tpu.memref_slice %arg5[%c1_i32_62] : memref<2x!tpu.dma_semaphore, #tpu.memory_space<semaphore_mem>> -> memref<1x!tpu.dma_semaphore, #tpu.memory_space<semaphore_mem>>
    %72 = tpu.memref_squeeze %71 : memref<1x!tpu.dma_semaphore, #tpu.memory_space<semaphore_mem>> -> memref<!tpu.dma_semaphore, #tpu.memory_space<semaphore_mem>>
    tpu.wait_dma2 semaphore(%72 : memref<!tpu.dma_semaphore, #tpu.memory_space<semaphore_mem>>) src(%68 : memref<256x256xbf16, #tpu.memory_space<any>>) dst(%70 : memref<256x256xbf16, #tpu.memory_space<vmem>>)
    %c1_67 = arith.constant 1 : index
    %c0_68 = arith.constant 0 : index
    %c0_69 = arith.constant 0 : index
    %73 = vector.load %arg4[%c1_67, %c0_68, %c0_69] : memref<2x256x256xbf16, #tpu.memory_space<vmem>>, vector<1x256x256xbf16>
    %74 = vector.shape_cast %73 : vector<1x256x256xbf16> to vector<256x256xbf16>
    %75 = arith.truncf %62 : vector<8x256xf32> to vector<8x256xbf16>
    %cst_70 = arith.constant dense<0.000000e+00> : vector<8x256xf32>
    %76 = tpu.matmul %75, %74, %cst_70 {dimension_numbers = #tpu.dot_dimension_numbers<[1], [0], [0], [1], [0, 0, 1, 1], [], []>} : vector<8x256xbf16>, vector<256x256xbf16>, vector<8x256xf32> -> vector<8x256xf32>
    %c3 = arith.constant 3 : index
    %c0_71 = arith.constant 0 : index
    %77 = vector.load %arg1[%c3, %c0_71] : memref<8x256xf32, #tpu.memory_space<vmem>>, vector<1x256xf32>
    %78 = vector.broadcast %77 : vector<1x256xf32> to vector<8x256xf32>
    %79 = arith.addf %76, %78 : vector<8x256xf32>
    %cst_72 = arith.constant 0.000000e+00 : f32
    %80 = vector.broadcast %cst_72 : f32 to vector<8x256xf32>
    %81 = arith.maximumf %79, %80 : vector<8x256xf32>
    %c1_i32_73 = arith.constant 1 : i32
    %c1_i32_74 = arith.constant 1 : i32
    %c1152_i32 = arith.constant 1152 : i32
    %c0_i32_75 = arith.constant 0 : i32
    %82 = tpu.memref_slice %arg2[%c1152_i32, %c0_i32_75] : memref<1536x256xbf16, #tpu.memory_space<any>> -> memref<256x256xbf16, #tpu.memory_space<any>>
    %c0_i32_76 = arith.constant 0 : i32
    %c0_i32_77 = arith.constant 0 : i32
    %83 = tpu.memref_slice %arg4[%c1_i32_73, %c0_i32_76, %c0_i32_77] : memref<2x256x256xbf16, #tpu.memory_space<vmem>> -> memref<1x256x256xbf16, #tpu.memory_space<vmem>>
    %84 = tpu.memref_squeeze %83 : memref<1x256x256xbf16, #tpu.memory_space<vmem>> -> memref<256x256xbf16, #tpu.memory_space<vmem>>
    %85 = tpu.memref_slice %arg5[%c1_i32_74] : memref<2x!tpu.dma_semaphore, #tpu.memory_space<semaphore_mem>> -> memref<1x!tpu.dma_semaphore, #tpu.memory_space<semaphore_mem>>
    %86 = tpu.memref_squeeze %85 : memref<1x!tpu.dma_semaphore, #tpu.memory_space<semaphore_mem>> -> memref<!tpu.dma_semaphore, #tpu.memory_space<semaphore_mem>>
    tpu.enqueue_dma source(%82 : memref<256x256xbf16, #tpu.memory_space<any>>) target(%84 : memref<256x256xbf16, #tpu.memory_space<vmem>>) target_semaphore(%86 : memref<!tpu.dma_semaphore, #tpu.memory_space<semaphore_mem>>)
    %c0_i32_78 = arith.constant 0 : i32
    %c0_i32_79 = arith.constant 0 : i32
    %c896_i32_80 = arith.constant 896 : i32
    %c0_i32_81 = arith.constant 0 : i32
    %87 = tpu.memref_slice %arg2[%c896_i32_80, %c0_i32_81] : memref<1536x256xbf16, #tpu.memory_space<any>> -> memref<256x256xbf16, #tpu.memory_space<any>>
    %c0_i32_82 = arith.constant 0 : i32
    %c0_i32_83 = arith.constant 0 : i32
    %88 = tpu.memref_slice %arg4[%c0_i32_78, %c0_i32_82, %c0_i32_83] : memref<2x256x256xbf16, #tpu.memory_space<vmem>> -> memref<1x256x256xbf16, #tpu.memory_space<vmem>>
    %89 = tpu.memref_squeeze %88 : memref<1x256x256xbf16, #tpu.memory_space<vmem>> -> memref<256x256xbf16, #tpu.memory_space<vmem>>
    %90 = tpu.memref_slice %arg5[%c0_i32_79] : memref<2x!tpu.dma_semaphore, #tpu.memory_space<semaphore_mem>> -> memref<1x!tpu.dma_semaphore, #tpu.memory_space<semaphore_mem>>
    %91 = tpu.memref_squeeze %90 : memref<1x!tpu.dma_semaphore, #tpu.memory_space<semaphore_mem>> -> memref<!tpu.dma_semaphore, #tpu.memory_space<semaphore_mem>>
    tpu.wait_dma2 semaphore(%91 : memref<!tpu.dma_semaphore, #tpu.memory_space<semaphore_mem>>) src(%87 : memref<256x256xbf16, #tpu.memory_space<any>>) dst(%89 : memref<256x256xbf16, #tpu.memory_space<vmem>>)
    %c0_84 = arith.constant 0 : index
    %c0_85 = arith.constant 0 : index
    %c0_86 = arith.constant 0 : index
    %92 = vector.load %arg4[%c0_84, %c0_85, %c0_86] : memref<2x256x256xbf16, #tpu.memory_space<vmem>>, vector<1x256x256xbf16>
    %93 = vector.shape_cast %92 : vector<1x256x256xbf16> to vector<256x256xbf16>
    %94 = arith.truncf %81 : vector<8x256xf32> to vector<8x256xbf16>
    %cst_87 = arith.constant dense<0.000000e+00> : vector<8x256xf32>
    %95 = tpu.matmul %94, %93, %cst_87 {dimension_numbers = #tpu.dot_dimension_numbers<[1], [0], [0], [1], [0, 0, 1, 1], [], []>} : vector<8x256xbf16>, vector<256x256xbf16>, vector<8x256xf32> -> vector<8x256xf32>
    %96 = arith.addf %62, %95 : vector<8x256xf32>
    %c4 = arith.constant 4 : index
    %c0_88 = arith.constant 0 : index
    %97 = vector.load %arg1[%c4, %c0_88] : memref<8x256xf32, #tpu.memory_space<vmem>>, vector<1x256xf32>
    %98 = vector.broadcast %97 : vector<1x256xf32> to vector<8x256xf32>
    %99 = arith.addf %96, %98 : vector<8x256xf32>
    %cst_89 = arith.constant 0.000000e+00 : f32
    %100 = vector.broadcast %cst_89 : f32 to vector<8x256xf32>
    %101 = arith.maximumf %99, %100 : vector<8x256xf32>
    %c0_i32_90 = arith.constant 0 : i32
    %c0_i32_91 = arith.constant 0 : i32
    %c1408_i32 = arith.constant 1408 : i32
    %c0_i32_92 = arith.constant 0 : i32
    %102 = tpu.memref_slice %arg2[%c1408_i32, %c0_i32_92] : memref<1536x256xbf16, #tpu.memory_space<any>> -> memref<128x256xbf16, #tpu.memory_space<any>>
    %c0_i32_93 = arith.constant 0 : i32
    %c0_i32_94 = arith.constant 0 : i32
    %103 = tpu.memref_slice %arg4[%c0_i32_90, %c0_i32_93, %c0_i32_94] : memref<2x256x256xbf16, #tpu.memory_space<vmem>> -> memref<1x128x256xbf16, #tpu.memory_space<vmem>>
    %104 = tpu.memref_squeeze %103 : memref<1x128x256xbf16, #tpu.memory_space<vmem>> -> memref<128x256xbf16, #tpu.memory_space<vmem>>
    %105 = tpu.memref_slice %arg5[%c0_i32_91] : memref<2x!tpu.dma_semaphore, #tpu.memory_space<semaphore_mem>> -> memref<1x!tpu.dma_semaphore, #tpu.memory_space<semaphore_mem>>
    %106 = tpu.memref_squeeze %105 : memref<1x!tpu.dma_semaphore, #tpu.memory_space<semaphore_mem>> -> memref<!tpu.dma_semaphore, #tpu.memory_space<semaphore_mem>>
    tpu.enqueue_dma source(%102 : memref<128x256xbf16, #tpu.memory_space<any>>) target(%104 : memref<128x256xbf16, #tpu.memory_space<vmem>>) target_semaphore(%106 : memref<!tpu.dma_semaphore, #tpu.memory_space<semaphore_mem>>)
    %c1_i32_95 = arith.constant 1 : i32
    %c1_i32_96 = arith.constant 1 : i32
    %c1152_i32_97 = arith.constant 1152 : i32
    %c0_i32_98 = arith.constant 0 : i32
    %107 = tpu.memref_slice %arg2[%c1152_i32_97, %c0_i32_98] : memref<1536x256xbf16, #tpu.memory_space<any>> -> memref<256x256xbf16, #tpu.memory_space<any>>
    %c0_i32_99 = arith.constant 0 : i32
    %c0_i32_100 = arith.constant 0 : i32
    %108 = tpu.memref_slice %arg4[%c1_i32_95, %c0_i32_99, %c0_i32_100] : memref<2x256x256xbf16, #tpu.memory_space<vmem>> -> memref<1x256x256xbf16, #tpu.memory_space<vmem>>
    %109 = tpu.memref_squeeze %108 : memref<1x256x256xbf16, #tpu.memory_space<vmem>> -> memref<256x256xbf16, #tpu.memory_space<vmem>>
    %110 = tpu.memref_slice %arg5[%c1_i32_96] : memref<2x!tpu.dma_semaphore, #tpu.memory_space<semaphore_mem>> -> memref<1x!tpu.dma_semaphore, #tpu.memory_space<semaphore_mem>>
    %111 = tpu.memref_squeeze %110 : memref<1x!tpu.dma_semaphore, #tpu.memory_space<semaphore_mem>> -> memref<!tpu.dma_semaphore, #tpu.memory_space<semaphore_mem>>
    tpu.wait_dma2 semaphore(%111 : memref<!tpu.dma_semaphore, #tpu.memory_space<semaphore_mem>>) src(%107 : memref<256x256xbf16, #tpu.memory_space<any>>) dst(%109 : memref<256x256xbf16, #tpu.memory_space<vmem>>)
    %c1_101 = arith.constant 1 : index
    %c0_102 = arith.constant 0 : index
    %c0_103 = arith.constant 0 : index
    %112 = vector.load %arg4[%c1_101, %c0_102, %c0_103] : memref<2x256x256xbf16, #tpu.memory_space<vmem>>, vector<1x256x256xbf16>
    %113 = vector.shape_cast %112 : vector<1x256x256xbf16> to vector<256x256xbf16>
    %114 = arith.truncf %101 : vector<8x256xf32> to vector<8x256xbf16>
    %cst_104 = arith.constant dense<0.000000e+00> : vector<8x256xf32>
    %115 = tpu.matmul %114, %113, %cst_104 {dimension_numbers = #tpu.dot_dimension_numbers<[1], [0], [0], [1], [0, 0, 1, 1], [], []>} : vector<8x256xbf16>, vector<256x256xbf16>, vector<8x256xf32> -> vector<8x256xf32>
    %116 = vector.extract_strided_slice %115 {offsets = [0, 0], sizes = [8, 128], strides = [1, 1]} : vector<8x256xf32> to vector<8x128xf32>
    %c5 = arith.constant 5 : index
    %c0_105 = arith.constant 0 : index
    %117 = vector.load %arg1[%c5, %c0_105] : memref<8x256xf32, #tpu.memory_space<vmem>>, vector<1x128xf32>
    %118 = vector.broadcast %117 : vector<1x128xf32> to vector<8x128xf32>
    %119 = arith.addf %116, %118 : vector<8x128xf32>
    %cst_106 = arith.constant 0.000000e+00 : f32
    %120 = vector.broadcast %cst_106 : f32 to vector<8x128xf32>
    %121 = arith.maximumf %119, %120 : vector<8x128xf32>
    %c6 = arith.constant 6 : index
    %c0_107 = arith.constant 0 : index
    %122 = vector.load %arg1[%c6, %c0_107] : memref<8x256xf32, #tpu.memory_space<vmem>>, vector<1x128xf32>
    %123 = vector.broadcast %122 : vector<1x128xf32> to vector<8x128xf32>
    %124 = arith.mulf %121, %123 : vector<8x128xf32>
    %cst_108 = arith.constant dense<0.000000e+00> : vector<8xf32>
    %125 = vector.multi_reduction <add>, %124, %cst_108 [1] : vector<8x128xf32> to vector<8xf32>
    %126 = vector.shape_cast %125 : vector<8xf32> to vector<8x1xf32>
    %c6_109 = arith.constant 6 : index
    %c128 = arith.constant 128 : index
    %127 = vector.load %arg1[%c6_109, %c128] : memref<8x256xf32, #tpu.memory_space<vmem>>, vector<1x1xf32>
    %128 = vector.broadcast %127 : vector<1x1xf32> to vector<8x1xf32>
    %129 = arith.addf %126, %128 : vector<8x1xf32>
    %130 = math.absf %129 : vector<8x1xf32>
    %cst_110 = arith.constant 0.000000e+00 : f32
    %131 = vector.broadcast %cst_110 : f32 to vector<8x1xf32>
    %132 = arith.subf %131, %130 : vector<8x1xf32>
    %133 = math.exp %132 : vector<8x1xf32>
    %cst_111 = arith.constant 0.000000e+00 : f32
    %134 = vector.broadcast %cst_111 : f32 to vector<8x1xf32>
    %135 = arith.cmpf oge, %129, %134 : vector<8x1xf32>
    %cst_112 = arith.constant 1.000000e+00 : f32
    %136 = vector.broadcast %cst_112 : f32 to vector<8x1xf32>
    %137 = arith.addf %136, %133 : vector<8x1xf32>
    %cst_113 = arith.constant 1.000000e+00 : f32
    %138 = vector.broadcast %cst_113 : f32 to vector<8x1xf32>
    %139 = arith.divf %138, %137 : vector<8x1xf32>
    %cst_114 = arith.constant 1.000000e+00 : f32
    %140 = vector.broadcast %cst_114 : f32 to vector<8x1xf32>
    %141 = arith.addf %140, %133 : vector<8x1xf32>
    %142 = arith.divf %133, %141 : vector<8x1xf32>
    %143 = arith.select %135, %139, %142 : vector<8x1xi1>, vector<8x1xf32>
    %144 = vector.extract_strided_slice %115 {offsets = [0, 128], sizes = [8, 128], strides = [1, 1]} : vector<8x256xf32> to vector<8x128xf32>
    %145 = vector.broadcast %143 : vector<8x1xf32> to vector<8x128xf32>
    %146 = arith.mulf %145, %144 : vector<8x128xf32>
    %c5_115 = arith.constant 5 : index
    %c128_116 = arith.constant 128 : index
    %147 = vector.load %arg1[%c5_115, %c128_116] : memref<8x256xf32, #tpu.memory_space<vmem>>, vector<1x128xf32>
    %148 = vector.broadcast %147 : vector<1x128xf32> to vector<8x128xf32>
    %149 = arith.addf %146, %148 : vector<8x128xf32>
    %cst_117 = arith.constant 0.000000e+00 : f32
    %150 = vector.broadcast %cst_117 : f32 to vector<8x128xf32>
    %151 = arith.maximumf %149, %150 : vector<8x128xf32>
    %c0_i32_118 = arith.constant 0 : i32
    %c0_i32_119 = arith.constant 0 : i32
    %c1408_i32_120 = arith.constant 1408 : i32
    %c0_i32_121 = arith.constant 0 : i32
    %152 = tpu.memref_slice %arg2[%c1408_i32_120, %c0_i32_121] : memref<1536x256xbf16, #tpu.memory_space<any>> -> memref<128x256xbf16, #tpu.memory_space<any>>
    %c0_i32_122 = arith.constant 0 : i32
    %c0_i32_123 = arith.constant 0 : i32
    %153 = tpu.memref_slice %arg4[%c0_i32_118, %c0_i32_122, %c0_i32_123] : memref<2x256x256xbf16, #tpu.memory_space<vmem>> -> memref<1x128x256xbf16, #tpu.memory_space<vmem>>
    %154 = tpu.memref_squeeze %153 : memref<1x128x256xbf16, #tpu.memory_space<vmem>> -> memref<128x256xbf16, #tpu.memory_space<vmem>>
    %155 = tpu.memref_slice %arg5[%c0_i32_119] : memref<2x!tpu.dma_semaphore, #tpu.memory_space<semaphore_mem>> -> memref<1x!tpu.dma_semaphore, #tpu.memory_space<semaphore_mem>>
    %156 = tpu.memref_squeeze %155 : memref<1x!tpu.dma_semaphore, #tpu.memory_space<semaphore_mem>> -> memref<!tpu.dma_semaphore, #tpu.memory_space<semaphore_mem>>
    tpu.wait_dma2 semaphore(%156 : memref<!tpu.dma_semaphore, #tpu.memory_space<semaphore_mem>>) src(%152 : memref<128x256xbf16, #tpu.memory_space<any>>) dst(%154 : memref<128x256xbf16, #tpu.memory_space<vmem>>)
    %c0_124 = arith.constant 0 : index
    %c0_125 = arith.constant 0 : index
    %c0_126 = arith.constant 0 : index
    %157 = vector.load %arg4[%c0_124, %c0_125, %c0_126] : memref<2x256x256xbf16, #tpu.memory_space<vmem>>, vector<1x128x128xbf16>
    %158 = vector.shape_cast %157 : vector<1x128x128xbf16> to vector<128x128xbf16>
    %159 = arith.truncf %151 : vector<8x128xf32> to vector<8x128xbf16>
    %cst_127 = arith.constant dense<0.000000e+00> : vector<8x128xf32>
    %160 = tpu.matmul %159, %158, %cst_127 {dimension_numbers = #tpu.dot_dimension_numbers<[1], [0], [0], [1], [0, 0, 1, 1], [], []>} : vector<8x128xbf16>, vector<128x128xbf16>, vector<8x128xf32> -> vector<8x128xf32>
    %c7 = arith.constant 7 : index
    %c0_128 = arith.constant 0 : index
    %161 = vector.load %arg1[%c7, %c0_128] : memref<8x256xf32, #tpu.memory_space<vmem>>, vector<1x128xf32>
    %162 = vector.broadcast %161 : vector<1x128xf32> to vector<8x128xf32>
    %163 = arith.addf %160, %162 : vector<8x128xf32>
    %cst_129 = arith.constant 0.000000e+00 : f32
    %164 = vector.broadcast %cst_129 : f32 to vector<8x128xf32>
    %165 = arith.maximumf %163, %164 : vector<8x128xf32>
    %c0_130 = arith.constant 0 : index
    %c0_131 = arith.constant 0 : index
    %c128_132 = arith.constant 128 : index
    %166 = vector.load %arg4[%c0_130, %c0_131, %c128_132] : memref<2x256x256xbf16, #tpu.memory_space<vmem>>, vector<1x128x128xbf16>
    %167 = vector.shape_cast %166 : vector<1x128x128xbf16> to vector<128x128xbf16>
    %168 = arith.truncf %165 : vector<8x128xf32> to vector<8x128xbf16>
    %cst_133 = arith.constant dense<0.000000e+00> : vector<8x128xf32>
    %169 = tpu.matmul %168, %167, %cst_133 {dimension_numbers = #tpu.dot_dimension_numbers<[1], [0], [0], [1], [0, 0, 1, 1], [], []>} : vector<8x128xbf16>, vector<128x128xbf16>, vector<8x128xf32> -> vector<8x128xf32>
    %c7_134 = arith.constant 7 : index
    %c128_135 = arith.constant 128 : index
    %170 = vector.load %arg1[%c7_134, %c128_135] : memref<8x256xf32, #tpu.memory_space<vmem>>, vector<1x128xf32>
    %171 = vector.broadcast %170 : vector<1x128xf32> to vector<8x128xf32>
    %172 = arith.addf %169, %171 : vector<8x128xf32>
    %173 = tpu.iota {dimensions = array<i32: 1>} : vector<8x128xi32>
    %c127_i32 = arith.constant 127 : i32
    %174 = vector.broadcast %c127_i32 : i32 to vector<8x128xi32>
    %175 = arith.cmpi eq, %173, %174 : vector<8x128xi32>
    %176 = vector.shape_cast %143 : vector<8x1xf32> to vector<8x1xf32>
    %177 = vector.broadcast %176 : vector<8x1xf32> to vector<8x128xf32>
    %178 = arith.select %175, %177, %172 : vector<8x128xi1>, vector<8x128xf32>
    %c0_136 = arith.constant 0 : index
    %c0_137 = arith.constant 0 : index
    %179 = vector.load %arg3[%c0_136, %c0_137] : memref<8x128xf32, #tpu.memory_space<vmem>>, vector<8x128xf32>
    tpu.vector_store %arg3[%c0_136, %c0_137], %178 {strides = array<i32>} : memref<8x128xf32, #tpu.memory_space<vmem>>, vector<8x128xf32>,
    return
  }
}

</mosaic_0001>

<llo_original>
// kernel: enhanced_dysarthria_classifier.1
$region0: #{enhanced_dysarthria_classifier.1}
  #allocation0 [shape = 'u32[]', space=smem, size = 0x4, offset = 0x4, fixed_abs, tag = 'smem constant byte address 0x4 - core index']
  #allocation1 [shape = 'u32[144,128]{1,0:T(1,128)}', space=vmem, size = 0x12000, scoped, tag = 'internal scratch']
  #allocation2 [shape = 'bf16[2,256,256]{2,1,0:T(16,128)(2,1)}', space=vmem, size = 0x40000, scoped, tag = 'scratch operand']
  #allocation3 [shape = 's32[2]{0}', space=sflag, size = 0x8, scoped, tag = 'scratch operand']
  #allocation4 [shape = 's32[]', space=sflag, size = 0x4, offset = 0, fixed_abs, tag = 'sflag constant byte address 0x0 - dummy sync flag']
  #allocation6 [shape = 's32[]', space=sflag, size = 0x4, offset = 0, fixed_abs, tag = 'sflag constant byte address 0x0 - dummy sync flag']
  #allocation8 [shape = 's32[]', space=sflag, size = 0x4, offset = 0, fixed_abs, tag = 'sflag constant byte address 0x0 - dummy sync flag']
  #allocation10 [shape = 's32[]', space=sflag, size = 0x4, offset = 0, fixed_abs, tag = 'sflag constant byte address 0x0 - dummy sync flag']
  #allocation12 [shape = 's32[]', space=sflag, size = 0x4, offset = 0, fixed_abs, tag = 'sflag constant byte address 0x0 - dummy sync flag']
  #allocation14 [shape = 's32[]', space=sflag, size = 0x4, offset = 0, fixed_abs, tag = 'sflag constant byte address 0x0 - dummy sync flag']
  #allocation16 [shape = 's32[]', space=sflag, size = 0x4, offset = 0, fixed_abs, tag = 'sflag constant byte address 0x0 - dummy sync flag']
  %s0 = inlined_call_operand.vmem [shape: bf16[8,128], index: 0, kind: input, shape index: {}]
  %s1 = inlined_call_operand.vmem [shape: f32[8,256], index: 1, kind: input, shape index: {}]
  %s2 = inlined_call_operand.hbm [shape: bf16[1536,256], index: 2, kind: input, shape index: {}]
  %s3 = inlined_call_operand.vmem [shape: f32[8,128], index: 3, kind: output, shape index: {}]
  %s4 = sld [smem:[#allocation0]]
  $region18: #{enhanced_dysarthria_classifier.1} parent=0
    _
  %s6 = ssub.s32 1, %s4
  %s7 = scalar_select 0, %s6, %s4
  $region1: #{enhanced_dysarthria_classifier.1} parent=0
    #allocation5 [shape = 'u32[9]{0}', space=smem, size = 0x24, scoped, tag = 'DMA stride descriptor']
    #allocation7 [shape = 'u32[9]{0}', space=smem, size = 0x24, scoped, tag = 'DMA stride descriptor']
    #allocation9 [shape = 'u32[9]{0}', space=smem, size = 0x24, scoped, tag = 'DMA stride descriptor']
    #allocation11 [shape = 'u32[9]{0}', space=smem, size = 0x24, scoped, tag = 'DMA stride descriptor']
    #allocation13 [shape = 'u32[9]{0}', space=smem, size = 0x24, scoped, tag = 'DMA stride descriptor']
    #allocation15 [shape = 'u32[9]{0}', space=smem, size = 0x24, scoped, tag = 'DMA stride descriptor']
    #allocation17 [shape = 'u32[9]{0}', space=smem, size = 0x24, scoped, tag = 'DMA stride descriptor']
    // Predicated region
    $region2: #{enhanced_dysarthria_classifier.1} parent=1 // pred_check
      _
    $region3: #{enhanced_dysarthria_classifier.1} parent=1 // pred_check_branch
      %9 = sbr.rel (0) target = $region5
    $region4: #{enhanced_dysarthria_classifier.1} parent=1 // pred_region
      _
    $region5: #{enhanced_dysarthria_classifier.1} parent=1 // pred_fallthru
      _
    // Predicated region
    $region6: #{enhanced_dysarthria_classifier.1} parent=1 // pred_check
      _
    $region7: #{enhanced_dysarthria_classifier.1} parent=1 // pred_check_branch
      %11 = sbr.rel (0) target = $region9
    $region8: #{enhanced_dysarthria_classifier.1} parent=1 // pred_region
      _
    $region9: #{enhanced_dysarthria_classifier.1} parent=1 // pred_fallthru
      _
    %s14 = sshll.u32 1, 14
    %s15 = sxor.u32 4294967295, %s14
    %s17 = sld [smem:[#allocation0]]
    %s18 = sadd.s32 2, %s17
    %s20 = sshll.u32 7, 26
    %s21 = sxor.u32 4294967295, %s20
    %s22 = sand.u32 0, %s21
    %s23 = sshll.u32 %s18, 26
    %s24 = sor.u32 %s22, %s23
    %s25 = sshll.u32 [#allocation2], 4
    %s26 = int_to_ptr.vmem [resolvable:$true] %s25
    %29 = sst [smem:[#allocation5]] 256
    %s30 = scalar_lea.smem [#allocation5], 1
    %31 = sst [smem:[%s30]] 256
    %s32 = scalar_lea.smem [#allocation5], 2
    %33 = sst [smem:[%s32]] 2
    %s34 = scalar_lea.smem [#allocation5], 3
    %35 = sst [smem:[%s34]] 64
    %s36 = scalar_lea.smem [#allocation5], 4
    %37 = sst [smem:[%s36]] 128
    %s38 = scalar_lea.smem [#allocation5], 5
    %39 = sst [smem:[%s38]] 2
    %s40 = scalar_lea.smem [#allocation5], 6
    %41 = sst [smem:[%s40]] 128
    %s42 = scalar_lea.smem [#allocation5], 7
    %43 = sst [smem:[%s42]] 64
    %s44 = scalar_lea.smem [#allocation5], 8
    %45 = sst [smem:[%s44]] 4
    %47 = dma.general %s2, 2048, %s26, [#allocation3], [#allocation4], [#allocation5], %s24, 0
    %s48 = scalar_lea.hbm %s2, 2048
    %s49 = scalar_lea.vmem [#allocation2], 256
    %s50 = scalar_lea.sflag [#allocation3], 1
    %s52 = sshll.u32 1, 14
    %s53 = sxor.u32 4294967295, %s52
    %s55 = sadd.s32 2, %s17
    %s57 = sshll.u32 7, 26
    %s58 = sxor.u32 4294967295, %s57
    %s59 = sand.u32 0, %s58
    %s60 = sshll.u32 %s55, 26
    %s61 = sor.u32 %s59, %s60
    %s62 = sshll.u32 %s49, 4
    %s63 = int_to_ptr.vmem [resolvable:$true] %s62
    %66 = sst [smem:[#allocation7]] 256
    %s67 = scalar_lea.smem [#allocation7], 1
    %68 = sst [smem:[%s67]] 256
    %s69 = scalar_lea.smem [#allocation7], 2
    %70 = sst [smem:[%s69]] 2
    %s71 = scalar_lea.smem [#allocation7], 3
    %72 = sst [smem:[%s71]] 64
    %s73 = scalar_lea.smem [#allocation7], 4
    %74 = sst [smem:[%s73]] 128
    %s75 = scalar_lea.smem [#allocation7], 5
    %76 = sst [smem:[%s75]] 2
    %s77 = scalar_lea.smem [#allocation7], 6
    %78 = sst [smem:[%s77]] 128
    %s79 = scalar_lea.smem [#allocation7], 7
    %80 = sst [smem:[%s79]] 64
    %s81 = scalar_lea.smem [#allocation7], 8
    %82 = sst [smem:[%s81]] 4
    %84 = dma.general %s48, 4096, %s63, %s50, [#allocation6], [#allocation7], %s61, 0
    %s85 = smul.u32 4, 16
    %s86 = smul.u32 %s85, 2
    %s87 = sshll.u32 %s86, 4
    %88 = dma.done [#allocation3], %s87
    %v89 = vld [vmem:[%s0] sm:$0xf]
    %v90 = vld [vmem:[#allocation2] sm:$0xff]
    %v91 = vld [vmem:[#allocation2 + $0x8] sm:$0xff]
    %v92 = vld [vmem:[#allocation2 + $0x10] sm:$0xff]
    %v93 = vld [vmem:[#allocation2 + $0x18] sm:$0xff]
    %v94 = vld [vmem:[#allocation2 + $0x20] sm:$0xff]
    %v95 = vld [vmem:[#allocation2 + $0x28] sm:$0xff]
    %v96 = vld [vmem:[#allocation2 + $0x30] sm:$0xff]
    %v97 = vld [vmem:[#allocation2 + $0x38] sm:$0xff]
    %v98 = vld [vmem:[#allocation2 + $0x40] sm:$0xff]
    %v99 = vld [vmem:[#allocation2 + $0x48] sm:$0xff]
    %v100 = vld [vmem:[#allocation2 + $0x50] sm:$0xff]
    %v101 = vld [vmem:[#allocation2 + $0x58] sm:$0xff]
    %v102 = vld [vmem:[#allocation2 + $0x60] sm:$0xff]
    %v103 = vld [vmem:[#allocation2 + $0x68] sm:$0xff]
    %v104 = vld [vmem:[#allocation2 + $0x70] sm:$0xff]
    %v105 = vld [vmem:[#allocation2 + $0x78] sm:$0xff]
    %v106 = vld [vmem:[%s1] ss:$8 sm:$0x3]
    %v108 = vlaneseq
    %v109 = vshrl.u32 %v108, 7
    %v110 = vsub.s32 0, %v109
    %v111 = vrot.slane %v106, %v110
    %v112 = vlaneseq
    %v113 = vshrl.u32 %v112, 7
    %v114 = vsub.s32 1, %v113
    %v115 = vrot.slane %v106, %v114
    %118 = vmatprep.subr.bf16.mxu0 %v91
    %119 = vmatpush1.bf16.msra.mxu0 %v90
    %120 = vmatprep.subr.bf16.mxu0 %v93
    %121 = vmatpush1.bf16.msra.mxu0 %v92
    %122 = vmatprep.subr.bf16.mxu0 %v95
    %123 = vmatpush1.bf16.msra.mxu0 %v94
    %124 = vmatprep.subr.bf16.mxu0 %v97
    %125 = vmatpush1.bf16.msra.mxu0 %v96
    %126 = vmatprep.subr.bf16.mxu0 %v99
    %127 = vmatpush1.bf16.msra.mxu0 %v98
    %128 = vmatprep.subr.bf16.mxu0 %v101
    %129 = vmatpush1.bf16.msra.mxu0 %v100
    %130 = vmatprep.subr.bf16.mxu0 %v103
    %131 = vmatpush1.bf16.msra.mxu0 %v102
    %132 = vmatprep.subr.bf16.mxu0 %v105
    %133 = vmatpush1.bf16.msra.mxu0 %v104
    %134 = vmatprep.subr.bf16.mxu0 0
    %135 = vmatpush1.bf16.msra.mxu0 0
    %136 = vmatprep.subr.bf16.mxu0 0
    %137 = vmatpush1.bf16.msra.mxu0 0
    %138 = vmatprep.subr.bf16.mxu0 0
    %139 = vmatpush1.bf16.msra.mxu0 0
    %140 = vmatprep.subr.bf16.mxu0 0
    %141 = vmatpush1.bf16.msra.mxu0 0
    %142 = vmatprep.subr.bf16.mxu0 0
    %143 = vmatpush1.bf16.msra.mxu0 0
    %144 = vmatprep.subr.bf16.mxu0 0
    %145 = vmatpush1.bf16.msra.mxu0 0
    %146 = vmatprep.subr.bf16.mxu0 0
    %147 = vmatpush1.bf16.msra.mxu0 0
    %148 = vmatprep.subr.bf16.mxu0 0
    %149 = vmatpush1.bf16.msra.mxu0 0
    %150 = vmatprep.mubr.bf16.mxu0 0
    %151 = vmatmul.mubr.bf16.gmra.mrb[0].mxu0 %v89
    %v152 = vpop.f32.mrb[0].mxu0
    %v153 = vadd.f32 %v111, %v152
    %v154 = vpop.f32.mrb[0].mxu0
    %v155 = vadd.f32 %v115, %v154
    %v156 = vpop.f32.mrb[0].mxu0
    %v157 = vpop.f32.mrb[0].mxu0
    %158 = vdwg.mxu0
    %v159 = vmax.f32 %v153, 0.0
    %v160 = vmax.f32 %v155, 0.0
    %s161 = scalar_lea.hbm %s2, 6144
    %s163 = sshll.u32 1, 14
    %s164 = sxor.u32 4294967295, %s163
    %s166 = sadd.s32 2, %s17
    %s168 = sshll.u32 7, 26
    %s169 = sxor.u32 4294967295, %s168
    %s170 = sand.u32 0, %s169
    %s171 = sshll.u32 %s166, 26
    %s172 = sor.u32 %s170, %s171
    %s173 = sshll.u32 [#allocation2], 4
    %s174 = int_to_ptr.vmem [resolvable:$true] %s173
    %177 = sst [smem:[#allocation9]] 256
    %s178 = scalar_lea.smem [#allocation9], 1
    %179 = sst [smem:[%s178]] 256
    %s180 = scalar_lea.smem [#allocation9], 2
    %181 = sst [smem:[%s180]] 2
    %s182 = scalar_lea.smem [#allocation9], 3
    %183 = sst [smem:[%s182]] 64
    %s184 = scalar_lea.smem [#allocation9], 4
    %185 = sst [smem:[%s184]] 128
    %s186 = scalar_lea.smem [#allocation9], 5
    %187 = sst [smem:[%s186]] 2
    %s188 = scalar_lea.smem [#allocation9], 6
    %189 = sst [smem:[%s188]] 128
    %s190 = scalar_lea.smem [#allocation9], 7
    %191 = sst [smem:[%s190]] 64
    %s192 = scalar_lea.smem [#allocation9], 8
    %193 = sst [smem:[%s192]] 4
    %195 = dma.general %s161, 4096, %s174, [#allocation3], [#allocation8], [#allocation9], %s172, 0
    %s196 = smul.u32 4, 32
    %s197 = smul.u32 %s196, 2
    %s198 = sshll.u32 %s197, 4
    %199 = dma.done %s50, %s198
    %v200 = vld [vmem:[%s49] sm:$0xff]
    %v201 = vld [vmem:[%s49 + $0x8] sm:$0xff]
    %v202 = vld [vmem:[%s49 + $0x10] sm:$0xff]
    %v203 = vld [vmem:[%s49 + $0x18] sm:$0xff]
    %v204 = vld [vmem:[%s49 + $0x20] sm:$0xff]
    %v205 = vld [vmem:[%s49 + $0x28] sm:$0xff]
    %v206 = vld [vmem:[%s49 + $0x30] sm:$0xff]
    %v207 = vld [vmem:[%s49 + $0x38] sm:$0xff]
    %v208 = vld [vmem:[%s49 + $0x40] sm:$0xff]
    %v209 = vld [vmem:[%s49 + $0x48] sm:$0xff]
    %v210 = vld [vmem:[%s49 + $0x50] sm:$0xff]
    %v211 = vld [vmem:[%s49 + $0x58] sm:$0xff]
    %v212 = vld [vmem:[%s49 + $0x60] sm:$0xff]
    %v213 = vld [vmem:[%s49 + $0x68] sm:$0xff]
    %v214 = vld [vmem:[%s49 + $0x70] sm:$0xff]
    %v215 = vld [vmem:[%s49 + $0x78] sm:$0xff]
    %v216 = vld [vmem:[%s49 + $0x80] sm:$0xff]
    %v217 = vld [vmem:[%s49 + $0x88] sm:$0xff]
    %v218 = vld [vmem:[%s49 + $0x90] sm:$0xff]
    %v219 = vld [vmem:[%s49 + $0x98] sm:$0xff]
    %v220 = vld [vmem:[%s49 + $0xa0] sm:$0xff]
    %v221 = vld [vmem:[%s49 + $0xa8] sm:$0xff]
    %v222 = vld [vmem:[%s49 + $0xb0] sm:$0xff]
    %v223 = vld [vmem:[%s49 + $0xb8] sm:$0xff]
    %v224 = vld [vmem:[%s49 + $0xc0] sm:$0xff]
    %v225 = vld [vmem:[%s49 + $0xc8] sm:$0xff]
    %v226 = vld [vmem:[%s49 + $0xd0] sm:$0xff]
    %v227 = vld [vmem:[%s49 + $0xd8] sm:$0xff]
    %v228 = vld [vmem:[%s49 + $0xe0] sm:$0xff]
    %v229 = vld [vmem:[%s49 + $0xe8] sm:$0xff]
    %v230 = vld [vmem:[%s49 + $0xf0] sm:$0xff]
    %v231 = vld [vmem:[%s49 + $0xf8] sm:$0xff]
    %v232 = vpack.c.bf16 %v159, %v159
    %v233 = vpack.c.bf16 %v160, %v160
    %s234 = scalar_lea.vmem %s1, 1
    %v235 = vld [vmem:[%s234] ss:$8 sm:$0x3]
    %v237 = vlaneseq
    %v238 = vshrl.u32 %v237, 7
    %v239 = vsub.s32 0, %v238
    %v240 = vrot.slane %v235, %v239
    %v241 = vlaneseq
    %v242 = vshrl.u32 %v241, 7
    %v243 = vsub.s32 1, %v242
    %v244 = vrot.slane %v235, %v243
    %247 = vmatprep.subr.bf16.mxu0 %v201
    %248 = vmatpush1.bf16.msra.mxu0 %v200
    %249 = vmatprep.subr.bf16.mxu0 %v203
    %250 = vmatpush1.bf16.msra.mxu0 %v202
    %251 = vmatprep.subr.bf16.mxu0 %v205
    %252 = vmatpush1.bf16.msra.mxu0 %v204
    %253 = vmatprep.subr.bf16.mxu0 %v207
    %254 = vmatpush1.bf16.msra.mxu0 %v206
    %255 = vmatprep.subr.bf16.mxu0 %v209
    %256 = vmatpush1.bf16.msra.mxu0 %v208
    %257 = vmatprep.subr.bf16.mxu0 %v211
    %258 = vmatpush1.bf16.msra.mxu0 %v210
    %259 = vmatprep.subr.bf16.mxu0 %v213
    %260 = vmatpush1.bf16.msra.mxu0 %v212
    %261 = vmatprep.subr.bf16.mxu0 %v215
    %262 = vmatpush1.bf16.msra.mxu0 %v214
    %263 = vmatprep.subr.bf16.mxu0 %v217
    %264 = vmatpush1.bf16.msra.mxu0 %v216
    %265 = vmatprep.subr.bf16.mxu0 %v219
    %266 = vmatpush1.bf16.msra.mxu0 %v218
    %267 = vmatprep.subr.bf16.mxu0 %v221
    %268 = vmatpush1.bf16.msra.mxu0 %v220
    %269 = vmatprep.subr.bf16.mxu0 %v223
    %270 = vmatpush1.bf16.msra.mxu0 %v222
    %271 = vmatprep.subr.bf16.mxu0 %v225
    %272 = vmatpush1.bf16.msra.mxu0 %v224
    %273 = vmatprep.subr.bf16.mxu0 %v227
    %274 = vmatpush1.bf16.msra.mxu0 %v226
    %275 = vmatprep.subr.bf16.mxu0 %v229
    %276 = vmatpush1.bf16.msra.mxu0 %v228
    %277 = vmatprep.subr.bf16.mxu0 %v231
    %278 = vmatpush1.bf16.msra.mxu0 %v230
    %279 = vmatprep.mubr.bf16.mxu0 %v233
    %280 = vmatmul.mubr.bf16.gmra.mrb[0].mxu0 %v232
    %v281 = vpop.f32.mrb[0].mxu0
    %v282 = vadd.f32 %v240, %v281
    %v283 = vpop.f32.mrb[0].mxu0
    %v284 = vadd.f32 %v244, %v283
    %v285 = vpop.f32.mrb[0].mxu0
    %v286 = vpop.f32.mrb[0].mxu0
    %287 = vdwg.mxu0
    %v288 = vmax.f32 %v282, 0.0
    %v289 = vmax.f32 %v284, 0.0
    %s290 = scalar_lea.hbm %s2, 10240
    %s292 = sshll.u32 1, 14
    %s293 = sxor.u32 4294967295, %s292
    %s295 = sadd.s32 2, %s17
    %s297 = sshll.u32 7, 26
    %s298 = sxor.u32 4294967295, %s297
    %s299 = sand.u32 0, %s298
    %s300 = sshll.u32 %s295, 26
    %s301 = sor.u32 %s299, %s300
    %s302 = sshll.u32 %s49, 4
    %s303 = int_to_ptr.vmem [resolvable:$true] %s302
    %306 = sst [smem:[#allocation11]] 256
    %s307 = scalar_lea.smem [#allocation11], 1
    %308 = sst [smem:[%s307]] 256
    %s309 = scalar_lea.smem [#allocation11], 2
    %310 = sst [smem:[%s309]] 2
    %s311 = scalar_lea.smem [#allocation11], 3
    %312 = sst [smem:[%s311]] 64
    %s313 = scalar_lea.smem [#allocation11], 4
    %314 = sst [smem:[%s313]] 128
    %s315 = scalar_lea.smem [#allocation11], 5
    %316 = sst [smem:[%s315]] 2
    %s317 = scalar_lea.smem [#allocation11], 6
    %318 = sst [smem:[%s317]] 128
    %s319 = scalar_lea.smem [#allocation11], 7
    %320 = sst [smem:[%s319]] 64
    %s321 = scalar_lea.smem [#allocation11], 8
    %322 = sst [smem:[%s321]] 4
    %324 = dma.general %s290, 4096, %s303, %s50, [#allocation10], [#allocation11], %s301, 0
    %s325 = sshll.u32 %s197, 4
    %326 = dma.done [#allocation3], %s325
    %v327 = vld [vmem:[#allocation2] sm:$0xff]
    %v328 = vld [vmem:[#allocation2 + $0x8] sm:$0xff]
    %v329 = vld [vmem:[#allocation2 + $0x10] sm:$0xff]
    %v330 = vld [vmem:[#allocation2 + $0x18] sm:$0xff]
    %v331 = vld [vmem:[#allocation2 + $0x20] sm:$0xff]
    %v332 = vld [vmem:[#allocation2 + $0x28] sm:$0xff]
    %v333 = vld [vmem:[#allocation2 + $0x30] sm:$0xff]
    %v334 = vld [vmem:[#allocation2 + $0x38] sm:$0xff]
    %v335 = vld [vmem:[#allocation2 + $0x40] sm:$0xff]
    %v336 = vld [vmem:[#allocation2 + $0x48] sm:$0xff]
    %v337 = vld [vmem:[#allocation2 + $0x50] sm:$0xff]
    %v338 = vld [vmem:[#allocation2 + $0x58] sm:$0xff]
    %v339 = vld [vmem:[#allocation2 + $0x60] sm:$0xff]
    %v340 = vld [vmem:[#allocation2 + $0x68] sm:$0xff]
    %v341 = vld [vmem:[#allocation2 + $0x70] sm:$0xff]
    %v342 = vld [vmem:[#allocation2 + $0x78] sm:$0xff]
    %v343 = vld [vmem:[#allocation2 + $0x80] sm:$0xff]
    %v344 = vld [vmem:[#allocation2 + $0x88] sm:$0xff]
    %v345 = vld [vmem:[#allocation2 + $0x90] sm:$0xff]
    %v346 = vld [vmem:[#allocation2 + $0x98] sm:$0xff]
    %v347 = vld [vmem:[#allocation2 + $0xa0] sm:$0xff]
    %v348 = vld [vmem:[#allocation2 + $0xa8] sm:$0xff]
    %v349 = vld [vmem:[#allocation2 + $0xb0] sm:$0xff]
    %v350 = vld [vmem:[#allocation2 + $0xb8] sm:$0xff]
    %v351 = vld [vmem:[#allocation2 + $0xc0] sm:$0xff]
    %v352 = vld [vmem:[#allocation2 + $0xc8] sm:$0xff]
    %v353 = vld [vmem:[#allocation2 + $0xd0] sm:$0xff]
    %v354 = vld [vmem:[#allocation2 + $0xd8] sm:$0xff]
    %v355 = vld [vmem:[#allocation2 + $0xe0] sm:$0xff]
    %v356 = vld [vmem:[#allocation2 + $0xe8] sm:$0xff]
    %v357 = vld [vmem:[#allocation2 + $0xf0] sm:$0xff]
    %v358 = vld [vmem:[#allocation2 + $0xf8] sm:$0xff]
    %v359 = vpack.c.bf16 %v288, %v288
    %v360 = vpack.c.bf16 %v289, %v289
    %361 = vmatprep.subr.bf16.mxu0 %v328
    %362 = vmatpush1.bf16.msra.mxu0 %v327
    %363 = vmatprep.subr.bf16.mxu0 %v330
    %364 = vmatpush1.bf16.msra.mxu0 %v329
    %365 = vmatprep.subr.bf16.mxu0 %v332
    %366 = vmatpush1.bf16.msra.mxu0 %v331
    %367 = vmatprep.subr.bf16.mxu0 %v334
    %368 = vmatpush1.bf16.msra.mxu0 %v333
    %369 = vmatprep.subr.bf16.mxu0 %v336
    %370 = vmatpush1.bf16.msra.mxu0 %v335
    %371 = vmatprep.subr.bf16.mxu0 %v338
    %372 = vmatpush1.bf16.msra.mxu0 %v337
    %373 = vmatprep.subr.bf16.mxu0 %v340
    %374 = vmatpush1.bf16.msra.mxu0 %v339
    %375 = vmatprep.subr.bf16.mxu0 %v342
    %376 = vmatpush1.bf16.msra.mxu0 %v341
    %377 = vmatprep.subr.bf16.mxu0 %v344
    %378 = vmatpush1.bf16.msra.mxu0 %v343
    %379 = vmatprep.subr.bf16.mxu0 %v346
    %380 = vmatpush1.bf16.msra.mxu0 %v345
    %381 = vmatprep.subr.bf16.mxu0 %v348
    %382 = vmatpush1.bf16.msra.mxu0 %v347
    %383 = vmatprep.subr.bf16.mxu0 %v350
    %384 = vmatpush1.bf16.msra.mxu0 %v349
    %385 = vmatprep.subr.bf16.mxu0 %v352
    %386 = vmatpush1.bf16.msra.mxu0 %v351
    %387 = vmatprep.subr.bf16.mxu0 %v354
    %388 = vmatpush1.bf16.msra.mxu0 %v353
    %389 = vmatprep.subr.bf16.mxu0 %v356
    %390 = vmatpush1.bf16.msra.mxu0 %v355
    %391 = vmatprep.subr.bf16.mxu0 %v358
    %392 = vmatpush1.bf16.msra.mxu0 %v357
    %393 = vmatprep.mubr.bf16.mxu0 %v360
    %394 = vmatmul.mubr.bf16.gmra.mrb[0].mxu0 %v359
    %v395 = vpop.f32.mrb[0].mxu0
    %v396 = vadd.f32 0.0, %v395
    %v397 = vpop.f32.mrb[0].mxu0
    %v398 = vadd.f32 0.0, %v397
    %v399 = vpop.f32.mrb[0].mxu0
    %v400 = vpop.f32.mrb[0].mxu0
    %401 = vdwg.mxu0
    %v402 = vadd.f32 %v159, %v396
    %v403 = vadd.f32 %v160, %v398
    %s404 = scalar_lea.vmem %s1, 2
    %v405 = vld [vmem:[%s404] ss:$8 sm:$0x3]
    %v407 = vlaneseq
    %v408 = vshrl.u32 %v407, 7
    %v409 = vsub.s32 0, %v408
    %v410 = vrot.slane %v405, %v409
    %v411 = vlaneseq
    %v412 = vshrl.u32 %v411, 7
    %v413 = vsub.s32 1, %v412
    %v414 = vrot.slane %v405, %v413
    %v417 = vadd.f32 %v402, %v410
    %v418 = vadd.f32 %v403, %v414
    %v419 = vmax.f32 %v417, 0.0
    %v420 = vmax.f32 %v418, 0.0
    %s421 = scalar_lea.hbm %s2, 14336
    %s423 = sshll.u32 1, 14
    %s424 = sxor.u32 4294967295, %s423
    %s426 = sadd.s32 2, %s17
    %s428 = sshll.u32 7, 26
    %s429 = sxor.u32 4294967295, %s428
    %s430 = sand.u32 0, %s429
    %s431 = sshll.u32 %s426, 26
    %s432 = sor.u32 %s430, %s431
    %s433 = sshll.u32 [#allocation2], 4
    %s434 = int_to_ptr.vmem [resolvable:$true] %s433
    %437 = sst [smem:[#allocation13]] 256
    %s438 = scalar_lea.smem [#allocation13], 1
    %439 = sst [smem:[%s438]] 256
    %s440 = scalar_lea.smem [#allocation13], 2
    %441 = sst [smem:[%s440]] 2
    %s442 = scalar_lea.smem [#allocation13], 3
    %443 = sst [smem:[%s442]] 64
    %s444 = scalar_lea.smem [#allocation13], 4
    %445 = sst [smem:[%s444]] 128
    %s446 = scalar_lea.smem [#allocation13], 5
    %447 = sst [smem:[%s446]] 2
    %s448 = scalar_lea.smem [#allocation13], 6
    %449 = sst [smem:[%s448]] 128
    %s450 = scalar_lea.smem [#allocation13], 7
    %451 = sst [smem:[%s450]] 64
    %s452 = scalar_lea.smem [#allocation13], 8
    %453 = sst [smem:[%s452]] 4
    %455 = dma.general %s421, 4096, %s434, [#allocation3], [#allocation12], [#allocation13], %s432, 0
    %s456 = sshll.u32 %s197, 4
    %457 = dma.done %s50, %s456
    %v458 = vld [vmem:[%s49] sm:$0xff]
    %v459 = vld [vmem:[%s49 + $0x8] sm:$0xff]
    %v460 = vld [vmem:[%s49 + $0x10] sm:$0xff]
    %v461 = vld [vmem:[%s49 + $0x18] sm:$0xff]
    %v462 = vld [vmem:[%s49 + $0x20] sm:$0xff]
    %v463 = vld [vmem:[%s49 + $0x28] sm:$0xff]
    %v464 = vld [vmem:[%s49 + $0x30] sm:$0xff]
    %v465 = vld [vmem:[%s49 + $0x38] sm:$0xff]
    %v466 = vld [vmem:[%s49 + $0x40] sm:$0xff]
    %v467 = vld [vmem:[%s49 + $0x48] sm:$0xff]
    %v468 = vld [vmem:[%s49 + $0x50] sm:$0xff]
    %v469 = vld [vmem:[%s49 + $0x58] sm:$0xff]
    %v470 = vld [vmem:[%s49 + $0x60] sm:$0xff]
    %v471 = vld [vmem:[%s49 + $0x68] sm:$0xff]
    %v472 = vld [vmem:[%s49 + $0x70] sm:$0xff]
    %v473 = vld [vmem:[%s49 + $0x78] sm:$0xff]
    %v474 = vld [vmem:[%s49 + $0x80] sm:$0xff]
    %v475 = vld [vmem:[%s49 + $0x88] sm:$0xff]
    %v476 = vld [vmem:[%s49 + $0x90] sm:$0xff]
    %v477 = vld [vmem:[%s49 + $0x98] sm:$0xff]
    %v478 = vld [vmem:[%s49 + $0xa0] sm:$0xff]
    %v479 = vld [vmem:[%s49 + $0xa8] sm:$0xff]
    %v480 = vld [vmem:[%s49 + $0xb0] sm:$0xff]
    %v481 = vld [vmem:[%s49 + $0xb8] sm:$0xff]
    %v482 = vld [vmem:[%s49 + $0xc0] sm:$0xff]
    %v483 = vld [vmem:[%s49 + $0xc8] sm:$0xff]
    %v484 = vld [vmem:[%s49 + $0xd0] sm:$0xff]
    %v485 = vld [vmem:[%s49 + $0xd8] sm:$0xff]
    %v486 = vld [vmem:[%s49 + $0xe0] sm:$0xff]
    %v487 = vld [vmem:[%s49 + $0xe8] sm:$0xff]
    %v488 = vld [vmem:[%s49 + $0xf0] sm:$0xff]
    %v489 = vld [vmem:[%s49 + $0xf8] sm:$0xff]
    %v490 = vpack.c.bf16 %v419, %v419
    %v491 = vpack.c.bf16 %v420, %v420
    %s492 = scalar_lea.vmem %s1, 3
    %v493 = vld [vmem:[%s492] ss:$8 sm:$0x3]
    %v495 = vlaneseq
    %v496 = vshrl.u32 %v495, 7
    %v497 = vsub.s32 0, %v496
    %v498 = vrot.slane %v493, %v497
    %v499 = vlaneseq
    %v500 = vshrl.u32 %v499, 7
    %v501 = vsub.s32 1, %v500
    %v502 = vrot.slane %v493, %v501
    %505 = vmatprep.subr.bf16.mxu0 %v459
    %506 = vmatpush1.bf16.msra.mxu0 %v458
    %507 = vmatprep.subr.bf16.mxu0 %v461
    %508 = vmatpush1.bf16.msra.mxu0 %v460
    %509 = vmatprep.subr.bf16.mxu0 %v463
    %510 = vmatpush1.bf16.msra.mxu0 %v462
    %511 = vmatprep.subr.bf16.mxu0 %v465
    %512 = vmatpush1.bf16.msra.mxu0 %v464
    %513 = vmatprep.subr.bf16.mxu0 %v467
    %514 = vmatpush1.bf16.msra.mxu0 %v466
    %515 = vmatprep.subr.bf16.mxu0 %v469
    %516 = vmatpush1.bf16.msra.mxu0 %v468
    %517 = vmatprep.subr.bf16.mxu0 %v471
    %518 = vmatpush1.bf16.msra.mxu0 %v470
    %519 = vmatprep.subr.bf16.mxu0 %v473
    %520 = vmatpush1.bf16.msra.mxu0 %v472
    %521 = vmatprep.subr.bf16.mxu0 %v475
    %522 = vmatpush1.bf16.msra.mxu0 %v474
    %523 = vmatprep.subr.bf16.mxu0 %v477
    %524 = vmatpush1.bf16.msra.mxu0 %v476
    %525 = vmatprep.subr.bf16.mxu0 %v479
    %526 = vmatpush1.bf16.msra.mxu0 %v478
    %527 = vmatprep.subr.bf16.mxu0 %v481
    %528 = vmatpush1.bf16.msra.mxu0 %v480
    %529 = vmatprep.subr.bf16.mxu0 %v483
    %530 = vmatpush1.bf16.msra.mxu0 %v482
    %531 = vmatprep.subr.bf16.mxu0 %v485
    %532 = vmatpush1.bf16.msra.mxu0 %v484
    %533 = vmatprep.subr.bf16.mxu0 %v487
    %534 = vmatpush1.bf16.msra.mxu0 %v486
    %535 = vmatprep.subr.bf16.mxu0 %v489
    %536 = vmatpush1.bf16.msra.mxu0 %v488
    %537 = vmatprep.mubr.bf16.mxu0 %v491
    %538 = vmatmul.mubr.bf16.gmra.mrb[0].mxu0 %v490
    %v539 = vpop.f32.mrb[0].mxu0
    %v540 = vadd.f32 %v498, %v539
    %v541 = vpop.f32.mrb[0].mxu0
    %v542 = vadd.f32 %v502, %v541
    %v543 = vpop.f32.mrb[0].mxu0
    %v544 = vpop.f32.mrb[0].mxu0
    %545 = vdwg.mxu0
    %v546 = vmax.f32 %v540, 0.0
    %v547 = vmax.f32 %v542, 0.0
    %s548 = scalar_lea.hbm %s2, 18432
    %s550 = sshll.u32 1, 14
    %s551 = sxor.u32 4294967295, %s550
    %s553 = sadd.s32 2, %s17
    %s555 = sshll.u32 7, 26
    %s556 = sxor.u32 4294967295, %s555
    %s557 = sand.u32 0, %s556
    %s558 = sshll.u32 %s553, 26
    %s559 = sor.u32 %s557, %s558
    %s560 = sshll.u32 %s49, 4
    %s561 = int_to_ptr.vmem [resolvable:$true] %s560
    %564 = sst [smem:[#allocation15]] 256
    %s565 = scalar_lea.smem [#allocation15], 1
    %566 = sst [smem:[%s565]] 256
    %s567 = scalar_lea.smem [#allocation15], 2
    %568 = sst [smem:[%s567]] 2
    %s569 = scalar_lea.smem [#allocation15], 3
    %570 = sst [smem:[%s569]] 64
    %s571 = scalar_lea.smem [#allocation15], 4
    %572 = sst [smem:[%s571]] 128
    %s573 = scalar_lea.smem [#allocation15], 5
    %574 = sst [smem:[%s573]] 2
    %s575 = scalar_lea.smem [#allocation15], 6
    %576 = sst [smem:[%s575]] 128
    %s577 = scalar_lea.smem [#allocation15], 7
    %578 = sst [smem:[%s577]] 64
    %s579 = scalar_lea.smem [#allocation15], 8
    %580 = sst [smem:[%s579]] 4
    %582 = dma.general %s548, 4096, %s561, %s50, [#allocation14], [#allocation15], %s559, 0
    %s583 = sshll.u32 %s197, 4
    %584 = dma.done [#allocation3], %s583
    %v585 = vld [vmem:[#allocation2] sm:$0xff]
    %v586 = vld [vmem:[#allocation2 + $0x8] sm:$0xff]
    %v587 = vld [vmem:[#allocation2 + $0x10] sm:$0xff]
    %v588 = vld [vmem:[#allocation2 + $0x18] sm:$0xff]
    %v589 = vld [vmem:[#allocation2 + $0x20] sm:$0xff]
    %v590 = vld [vmem:[#allocation2 + $0x28] sm:$0xff]
    %v591 = vld [vmem:[#allocation2 + $0x30] sm:$0xff]
    %v592 = vld [vmem:[#allocation2 + $0x38] sm:$0xff]
    %v593 = vld [vmem:[#allocation2 + $0x40] sm:$0xff]
    %v594 = vld [vmem:[#allocation2 + $0x48] sm:$0xff]
    %v595 = vld [vmem:[#allocation2 + $0x50] sm:$0xff]
    %v596 = vld [vmem:[#allocation2 + $0x58] sm:$0xff]
    %v597 = vld [vmem:[#allocation2 + $0x60] sm:$0xff]
    %v598 = vld [vmem:[#allocation2 + $0x68] sm:$0xff]
    %v599 = vld [vmem:[#allocation2 + $0x70] sm:$0xff]
    %v600 = vld [vmem:[#allocation2 + $0x78] sm:$0xff]
    %v601 = vld [vmem:[#allocation2 + $0x80] sm:$0xff]
    %v602 = vld [vmem:[#allocation2 + $0x88] sm:$0xff]
    %v603 = vld [vmem:[#allocation2 + $0x90] sm:$0xff]
    %v604 = vld [vmem:[#allocation2 + $0x98] sm:$0xff]
    %v605 = vld [vmem:[#allocation2 + $0xa0] sm:$0xff]
    %v606 = vld [vmem:[#allocation2 + $0xa8] sm:$0xff]
    %v607 = vld [vmem:[#allocation2 + $0xb0] sm:$0xff]
    %v608 = vld [vmem:[#allocation2 + $0xb8] sm:$0xff]
    %v609 = vld [vmem:[#allocation2 + $0xc0] sm:$0xff]
    %v610 = vld [vmem:[#allocation2 + $0xc8] sm:$0xff]
    %v611 = vld [vmem:[#allocation2 + $0xd0] sm:$0xff]
    %v612 = vld [vmem:[#allocation2 + $0xd8] sm:$0xff]
    %v613 = vld [vmem:[#allocation2 + $0xe0] sm:$0xff]
    %v614 = vld [vmem:[#allocation2 + $0xe8] sm:$0xff]
    %v615 = vld [vmem:[#allocation2 + $0xf0] sm:$0xff]
    %v616 = vld [vmem:[#allocation2 + $0xf8] sm:$0xff]
    %v617 = vpack.c.bf16 %v546, %v546
    %v618 = vpack.c.bf16 %v547, %v547
    %619 = vmatprep.subr.bf16.mxu0 %v586
    %620 = vmatpush1.bf16.msra.mxu0 %v585
    %621 = vmatprep.subr.bf16.mxu0 %v588
    %622 = vmatpush1.bf16.msra.mxu0 %v587
    %623 = vmatprep.subr.bf16.mxu0 %v590
    %624 = vmatpush1.bf16.msra.mxu0 %v589
    %625 = vmatprep.subr.bf16.mxu0 %v592
    %626 = vmatpush1.bf16.msra.mxu0 %v591
    %627 = vmatprep.subr.bf16.mxu0 %v594
    %628 = vmatpush1.bf16.msra.mxu0 %v593
    %629 = vmatprep.subr.bf16.mxu0 %v596
    %630 = vmatpush1.bf16.msra.mxu0 %v595
    %631 = vmatprep.subr.bf16.mxu0 %v598
    %632 = vmatpush1.bf16.msra.mxu0 %v597
    %633 = vmatprep.subr.bf16.mxu0 %v600
    %634 = vmatpush1.bf16.msra.mxu0 %v599
    %635 = vmatprep.subr.bf16.mxu0 %v602
    %636 = vmatpush1.bf16.msra.mxu0 %v601
    %637 = vmatprep.subr.bf16.mxu0 %v604
    %638 = vmatpush1.bf16.msra.mxu0 %v603
    %639 = vmatprep.subr.bf16.mxu0 %v606
    %640 = vmatpush1.bf16.msra.mxu0 %v605
    %641 = vmatprep.subr.bf16.mxu0 %v608
    %642 = vmatpush1.bf16.msra.mxu0 %v607
    %643 = vmatprep.subr.bf16.mxu0 %v610
    %644 = vmatpush1.bf16.msra.mxu0 %v609
    %645 = vmatprep.subr.bf16.mxu0 %v612
    %646 = vmatpush1.bf16.msra.mxu0 %v611
    %647 = vmatprep.subr.bf16.mxu0 %v614
    %648 = vmatpush1.bf16.msra.mxu0 %v613
    %649 = vmatprep.subr.bf16.mxu0 %v616
    %650 = vmatpush1.bf16.msra.mxu0 %v615
    %651 = vmatprep.mubr.bf16.mxu0 %v618
    %652 = vmatmul.mubr.bf16.gmra.mrb[0].mxu0 %v617
    %v653 = vpop.f32.mrb[0].mxu0
    %v654 = vadd.f32 0.0, %v653
    %v655 = vpop.f32.mrb[0].mxu0
    %v656 = vadd.f32 0.0, %v655
    %v657 = vpop.f32.mrb[0].mxu0
    %v658 = vpop.f32.mrb[0].mxu0
    %659 = vdwg.mxu0
    %v660 = vadd.f32 %v419, %v654
    %v661 = vadd.f32 %v420, %v656
    %s662 = scalar_lea.vmem %s1, 4
    %v663 = vld [vmem:[%s662] ss:$8 sm:$0x3]
    %v665 = vlaneseq
    %v666 = vshrl.u32 %v665, 7
    %v667 = vsub.s32 0, %v666
    %v668 = vrot.slane %v663, %v667
    %v669 = vlaneseq
    %v670 = vshrl.u32 %v669, 7
    %v671 = vsub.s32 1, %v670
    %v672 = vrot.slane %v663, %v671
    %v675 = vadd.f32 %v660, %v668
    %v676 = vadd.f32 %v661, %v672
    %v677 = vmax.f32 %v675, 0.0
    %v678 = vmax.f32 %v676, 0.0
    %s679 = scalar_lea.hbm %s2, 22528
    %s681 = sshll.u32 1, 14
    %s682 = sxor.u32 4294967295, %s681
    %s684 = sadd.s32 2, %s17
    %s686 = sshll.u32 7, 26
    %s687 = sxor.u32 4294967295, %s686
    %s688 = sand.u32 0, %s687
    %s689 = sshll.u32 %s684, 26
    %s690 = sor.u32 %s688, %s689
    %s691 = sshll.u32 [#allocation2], 4
    %s692 = int_to_ptr.vmem [resolvable:$true] %s691
    %695 = sst [smem:[#allocation17]] 256
    %s696 = scalar_lea.smem [#allocation17], 1
    %697 = sst [smem:[%s696]] 256
    %s698 = scalar_lea.smem [#allocation17], 2
    %699 = sst [smem:[%s698]] 2
    %s700 = scalar_lea.smem [#allocation17], 3
    %701 = sst [smem:[%s700]] 64
    %s702 = scalar_lea.smem [#allocation17], 4
    %703 = sst [smem:[%s702]] 128
    %s704 = scalar_lea.smem [#allocation17], 5
    %705 = sst [smem:[%s704]] 2
    %s706 = scalar_lea.smem [#allocation17], 6
    %707 = sst [smem:[%s706]] 128
    %s708 = scalar_lea.smem [#allocation17], 7
    %709 = sst [smem:[%s708]] 64
    %s710 = scalar_lea.smem [#allocation17], 8
    %711 = sst [smem:[%s710]] 4
    %713 = dma.general %s679, 2048, %s692, [#allocation3], [#allocation16], [#allocation17], %s690, 0
    %s714 = sshll.u32 %s197, 4
    %715 = dma.done %s50, %s714
    %v716 = vld [vmem:[%s49] sm:$0xff]
    %v717 = vld [vmem:[%s49 + $0x8] sm:$0xff]
    %v718 = vld [vmem:[%s49 + $0x10] sm:$0xff]
    %v719 = vld [vmem:[%s49 + $0x18] sm:$0xff]
    %v720 = vld [vmem:[%s49 + $0x20] sm:$0xff]
    %v721 = vld [vmem:[%s49 + $0x28] sm:$0xff]
    %v722 = vld [vmem:[%s49 + $0x30] sm:$0xff]
    %v723 = vld [vmem:[%s49 + $0x38] sm:$0xff]
    %v724 = vld [vmem:[%s49 + $0x40] sm:$0xff]
    %v725 = vld [vmem:[%s49 + $0x48] sm:$0xff]
    %v726 = vld [vmem:[%s49 + $0x50] sm:$0xff]
    %v727 = vld [vmem:[%s49 + $0x58] sm:$0xff]
    %v728 = vld [vmem:[%s49 + $0x60] sm:$0xff]
    %v729 = vld [vmem:[%s49 + $0x68] sm:$0xff]
    %v730 = vld [vmem:[%s49 + $0x70] sm:$0xff]
    %v731 = vld [vmem:[%s49 + $0x78] sm:$0xff]
    %v732 = vld [vmem:[%s49 + $0x80] sm:$0xff]
    %v733 = vld [vmem:[%s49 + $0x88] sm:$0xff]
    %v734 = vld [vmem:[%s49 + $0x90] sm:$0xff]
    %v735 = vld [vmem:[%s49 + $0x98] sm:$0xff]
    %v736 = vld [vmem:[%s49 + $0xa0] sm:$0xff]
    %v737 = vld [vmem:[%s49 + $0xa8] sm:$0xff]
    %v738 = vld [vmem:[%s49 + $0xb0] sm:$0xff]
    %v739 = vld [vmem:[%s49 + $0xb8] sm:$0xff]
    %v740 = vld [vmem:[%s49 + $0xc0] sm:$0xff]
    %v741 = vld [vmem:[%s49 + $0xc8] sm:$0xff]
    %v742 = vld [vmem:[%s49 + $0xd0] sm:$0xff]
    %v743 = vld [vmem:[%s49 + $0xd8] sm:$0xff]
    %v744 = vld [vmem:[%s49 + $0xe0] sm:$0xff]
    %v745 = vld [vmem:[%s49 + $0xe8] sm:$0xff]
    %v746 = vld [vmem:[%s49 + $0xf0] sm:$0xff]
    %v747 = vld [vmem:[%s49 + $0xf8] sm:$0xff]
    %v748 = vpack.c.bf16 %v677, %v677
    %v749 = vpack.c.bf16 %v678, %v678
    %750 = vmatprep.subr.bf16.mxu0 %v717
    %751 = vmatpush1.bf16.msra.mxu0 %v716
    %752 = vmatprep.subr.bf16.mxu0 %v719
    %753 = vmatpush1.bf16.msra.mxu0 %v718
    %754 = vmatprep.subr.bf16.mxu0 %v721
    %755 = vmatpush1.bf16.msra.mxu0 %v720
    %756 = vmatprep.subr.bf16.mxu0 %v723
    %757 = vmatpush1.bf16.msra.mxu0 %v722
    %758 = vmatprep.subr.bf16.mxu0 %v725
    %759 = vmatpush1.bf16.msra.mxu0 %v724
    %760 = vmatprep.subr.bf16.mxu0 %v727
    %761 = vmatpush1.bf16.msra.mxu0 %v726
    %762 = vmatprep.subr.bf16.mxu0 %v729
    %763 = vmatpush1.bf16.msra.mxu0 %v728
    %764 = vmatprep.subr.bf16.mxu0 %v731
    %765 = vmatpush1.bf16.msra.mxu0 %v730
    %766 = vmatprep.subr.bf16.mxu0 %v733
    %767 = vmatpush1.bf16.msra.mxu0 %v732
    %768 = vmatprep.subr.bf16.mxu0 %v735
    %769 = vmatpush1.bf16.msra.mxu0 %v734
    %770 = vmatprep.subr.bf16.mxu0 %v737
    %771 = vmatpush1.bf16.msra.mxu0 %v736
    %772 = vmatprep.subr.bf16.mxu0 %v739
    %773 = vmatpush1.bf16.msra.mxu0 %v738
    %774 = vmatprep.subr.bf16.mxu0 %v741
    %775 = vmatpush1.bf16.msra.mxu0 %v740
    %776 = vmatprep.subr.bf16.mxu0 %v743
    %777 = vmatpush1.bf16.msra.mxu0 %v742
    %778 = vmatprep.subr.bf16.mxu0 %v745
    %779 = vmatpush1.bf16.msra.mxu0 %v744
    %780 = vmatprep.subr.bf16.mxu0 %v747
    %781 = vmatpush1.bf16.msra.mxu0 %v746
    %782 = vmatprep.mubr.bf16.mxu0 %v749
    %783 = vmatmul.mubr.bf16.gmra.mrb[0].mxu0 %v748
    %v784 = vpop.f32.mrb[0].mxu0
    %v785 = vadd.f32 0.0, %v784
    %v786 = vpop.f32.mrb[0].mxu0
    %v787 = vadd.f32 0.0, %v786
    %v788 = vpop.f32.mrb[0].mxu0
    %v789 = vpop.f32.mrb[0].mxu0
    %790 = vdwg.mxu0
    %v791 = vld [vmem:[%s1 + $0x5] ss:$0 sm:$0xff]
    %v792 = vadd.f32 %v785, %v791
    %v793 = vmax.f32 %v792, 0.0
    %v794 = vld [vmem:[%s1 + $0x6] ss:$0 sm:$0xff]
    %v795 = vmul.f32 %v793, %v794
    %796 = vadd.xlane.f32.xlu0 %v795
    %v797 = vpop.xlane.xlu0 %796
    %v798 = vld [vmem:[%s1 + $0xe] ss:$0 sm:$0xff]
    %v799 = vadd.f32 %v797, %v798
    %v800 = vand.u32 2147483647, %v799
    %v801 = vsub.f32 0.0, %v800
    %v802 = vmul.f32 %v801, 1.442695
    %v803 = vpow.pop %v802
    %vm804 = vcmp.ge.f32.partialorder %v799, 0.0
    %v805 = vadd.f32 %v803, 1.0
    %v806 = vrcp.pop %v805
    %v807 = vmul.f32 1.0, %v806
    %v808 = vmul.f32 %v803, %v806
    %v809 = vsel %vm804, %v807, %v808
    %811 = vset.pattern.permute.xlu0 0
    %812 = vperm.xlu0 %811, %v809
    %v813 = vpop.permute.xlu0 %812
    %v815 = vmul.f32 %v813, %v787
    %v816 = vld [vmem:[%s1 + $0xd] ss:$0 sm:$0xff]
    %v817 = vadd.f32 %v815, %v816
    %v818 = vmax.f32 %v817, 0.0
    %s819 = sshll.u32 %s86, 4
    %820 = dma.done [#allocation3], %s819
    %v821 = vld [vmem:[#allocation2] sm:$0xff]
    %v822 = vld [vmem:[#allocation2 + $0x10] sm:$0xff]
    %v823 = vld [vmem:[#allocation2 + $0x20] sm:$0xff]
    %v824 = vld [vmem:[#allocation2 + $0x30] sm:$0xff]
    %v825 = vld [vmem:[#allocation2 + $0x40] sm:$0xff]
    %v826 = vld [vmem:[#allocation2 + $0x50] sm:$0xff]
    %v827 = vld [vmem:[#allocation2 + $0x60] sm:$0xff]
    %v828 = vld [vmem:[#allocation2 + $0x70] sm:$0xff]
    %v829 = vpack.c.bf16 %v818, %v818
    %v830 = vld [vmem:[%s1 + $0x7] ss:$0 sm:$0xff]
    %831 = vmatprep.subr.bf16.mxu0 0
    %832 = vmatpush1.bf16.msra.mxu0 %v821
    %833 = vmatprep.subr.bf16.mxu0 0
    %834 = vmatpush1.bf16.msra.mxu0 %v822
    %835 = vmatprep.subr.bf16.mxu0 0
    %836 = vmatpush1.bf16.msra.mxu0 %v823
    %837 = vmatprep.subr.bf16.mxu0 0
    %838 = vmatpush1.bf16.msra.mxu0 %v824
    %839 = vmatprep.subr.bf16.mxu0 0
    %840 = vmatpush1.bf16.msra.mxu0 %v825
    %841 = vmatprep.subr.bf16.mxu0 0
    %842 = vmatpush1.bf16.msra.mxu0 %v826
    %843 = vmatprep.subr.bf16.mxu0 0
    %844 = vmatpush1.bf16.msra.mxu0 %v827
    %845 = vmatprep.subr.bf16.mxu0 0
    %846 = vmatpush1.bf16.msra.mxu0 %v828
    %847 = vmatprep.subr.bf16.mxu0 0
    %848 = vmatpush1.bf16.msra.mxu0 0
    %849 = vmatprep.subr.bf16.mxu0 0
    %850 = vmatpush1.bf16.msra.mxu0 0
    %851 = vmatprep.subr.bf16.mxu0 0
    %852 = vmatpush1.bf16.msra.mxu0 0
    %853 = vmatprep.subr.bf16.mxu0 0
    %854 = vmatpush1.bf16.msra.mxu0 0
    %855 = vmatprep.subr.bf16.mxu0 0
    %856 = vmatpush1.bf16.msra.mxu0 0
    %857 = vmatprep.subr.bf16.mxu0 0
    %858 = vmatpush1.bf16.msra.mxu0 0
    %859 = vmatprep.subr.bf16.mxu0 0
    %860 = vmatpush1.bf16.msra.mxu0 0
    %861 = vmatprep.subr.bf16.mxu0 0
    %862 = vmatpush1.bf16.msra.mxu0 0
    %863 = vmatprep.mubr.bf16.mxu0 0
    %864 = vmatmul.mubr.bf16.gmra.mrb[0].mxu0 %v829
    %v865 = vpop.f32.mrb[0].mxu0
    %v866 = vadd.f32 %v830, %v865
    %v867 = vpop.f32.mrb[0].mxu0
    %v868 = vpop.f32.mrb[0].mxu0
    %v869 = vpop.f32.mrb[0].mxu0
    %870 = vdwg.mxu0
    %v871 = vmax.f32 %v866, 0.0
    %v872 = vld [vmem:[#allocation2 + $0x8] sm:$0xff]
    %v873 = vld [vmem:[#allocation2 + $0x18] sm:$0xff]
    %v874 = vld [vmem:[#allocation2 + $0x28] sm:$0xff]
    %v875 = vld [vmem:[#allocation2 + $0x38] sm:$0xff]
    %v876 = vld [vmem:[#allocation2 + $0x48] sm:$0xff]
    %v877 = vld [vmem:[#allocation2 + $0x58] sm:$0xff]
    %v878 = vld [vmem:[#allocation2 + $0x68] sm:$0xff]
    %v879 = vld [vmem:[#allocation2 + $0x78] sm:$0xff]
    %v880 = vpack.c.bf16 %v871, %v871
    %v881 = vld [vmem:[%s1 + $0xf] ss:$0 sm:$0xff]
    %882 = vmatprep.subr.bf16.mxu0 0
    %883 = vmatpush1.bf16.msra.mxu0 %v872
    %884 = vmatprep.subr.bf16.mxu0 0
    %885 = vmatpush1.bf16.msra.mxu0 %v873
    %886 = vmatprep.subr.bf16.mxu0 0
    %887 = vmatpush1.bf16.msra.mxu0 %v874
    %888 = vmatprep.subr.bf16.mxu0 0
    %889 = vmatpush1.bf16.msra.mxu0 %v875
    %890 = vmatprep.subr.bf16.mxu0 0
    %891 = vmatpush1.bf16.msra.mxu0 %v876
    %892 = vmatprep.subr.bf16.mxu0 0
    %893 = vmatpush1.bf16.msra.mxu0 %v877
    %894 = vmatprep.subr.bf16.mxu0 0
    %895 = vmatpush1.bf16.msra.mxu0 %v878
    %896 = vmatprep.subr.bf16.mxu0 0
    %897 = vmatpush1.bf16.msra.mxu0 %v879
    %898 = vmatprep.subr.bf16.mxu0 0
    %899 = vmatpush1.bf16.msra.mxu0 0
    %900 = vmatprep.subr.bf16.mxu0 0
    %901 = vmatpush1.bf16.msra.mxu0 0
    %902 = vmatprep.subr.bf16.mxu0 0
    %903 = vmatpush1.bf16.msra.mxu0 0
    %904 = vmatprep.subr.bf16.mxu0 0
    %905 = vmatpush1.bf16.msra.mxu0 0
    %906 = vmatprep.subr.bf16.mxu0 0
    %907 = vmatpush1.bf16.msra.mxu0 0
    %908 = vmatprep.subr.bf16.mxu0 0
    %909 = vmatpush1.bf16.msra.mxu0 0
    %910 = vmatprep.subr.bf16.mxu0 0
    %911 = vmatpush1.bf16.msra.mxu0 0
    %912 = vmatprep.subr.bf16.mxu0 0
    %913 = vmatpush1.bf16.msra.mxu0 0
    %914 = vmatprep.mubr.bf16.mxu0 0
    %915 = vmatmul.mubr.bf16.gmra.mrb[0].mxu0 %v880
    %v916 = vpop.f32.mrb[0].mxu0
    %v917 = vadd.f32 %v881, %v916
    %v918 = vpop.f32.mrb[0].mxu0
    %v919 = vpop.f32.mrb[0].mxu0
    %v920 = vpop.f32.mrb[0].mxu0
    %921 = vdwg.mxu0
    %v922 = vlaneseq
    %v923 = vand.u32 %v922, 127
    %vm924 = vcmp.eq.s32.totalorder %v923, 127
    %v925 = vsel %vm924, %v813, %v917
    %926 = vst [vmem:[%s3] sm:$0xff] %v925
    // Predicated region
    $region10: #{enhanced_dysarthria_classifier.1} parent=1 // pred_check
      _
    $region11: #{enhanced_dysarthria_classifier.1} parent=1 // pred_check_branch
      %928 = sbr.rel (0) target = $region13
    $region12: #{enhanced_dysarthria_classifier.1} parent=1 // pred_region
      _
    $region13: #{enhanced_dysarthria_classifier.1} parent=1 // pred_fallthru
      _
    // Predicated region
    $region14: #{enhanced_dysarthria_classifier.1} parent=1 // pred_check
      _
    $region15: #{enhanced_dysarthria_classifier.1} parent=1 // pred_check_branch
      %930 = sbr.rel (0) target = $region17
    $region16: #{enhanced_dysarthria_classifier.1} parent=1 // pred_region
      _
    $region17: #{enhanced_dysarthria_classifier.1} parent=1 // pred_fallthru
      _
  %931 = vsyncmov [#allocation3]
  %s932 = vpop.sfrf %931
  %p933 = scmp.eq.s32.totalorder %s932, 0
  %p934 = pneg %p933
  %936 = shalt.err (%p934)
  %s937 = scalar_lea.sflag [#allocation3], 1
  %938 = vsyncmov %s937
  %s939 = vpop.sfrf %938
  %p940 = scmp.eq.s32.totalorder %s939, 0
  %p941 = pneg %p940
  %943 = shalt.err (%p941)

</llo_original>
